<compile_context>
chip_gen: v7x
topology: tpu7x:2x2x1
jax: 0.10.0
libtpu: 0.0.40
codegen_flags: <defaults>
</compile_context>

<pallas_src>
import numpy as np
import jax
import jax.numpy as jnp
from jax.experimental import pallas as pl
from jax.experimental.pallas import tpu as pltpu


def _round_up(x, m):
    return -(-x // m) * m


# ---------------------------------------------------------------------------
# Pallas kernel: the whole network is a chain of MXU matmuls with a
# (+shift, LeakyReLU) epilogue.  Layer l is either
#   "dense" : y = h @ W_l                                  W_l : (K_pad, N_pad)
#   "banded": y = concat_b( h[:, s_b:s_b+band] @ W_l[b] )  W_l : (nb, band, 128)
# followed by y += shift_l and LeakyReLU (all layers but the last).
# Intermediates never leave VMEM/vregs; weights are grid-invariant blocks.
# ---------------------------------------------------------------------------
def _make_kernel(layer_meta, neg_slope):
    num_layers = len(layer_meta)

    def kernel(x_ref, *refs):
        o_ref = refs[-1]
        h = x_ref[...]                                     # (tm, K0) bf16
        for l, meta in enumerate(layer_meta):
            w_ref = refs[2 * l]
            s_ref = refs[2 * l + 1]
            if meta["kind"] == "banded":
                band = meta["band"]
                parts = [
                    jnp.dot(h[:, s:s + band], w_ref[b],
                            preferred_element_type=jnp.float32)
                    for b, s in enumerate(meta["starts"])
                ]
                y = jnp.concatenate(parts, axis=1)         # (tm, N_pad) f32
            else:
                y = jnp.dot(h, w_ref[...], preferred_element_type=jnp.float32)
            y = y + s_ref[...]                             # folded bias + BN shift
            if l < num_layers - 1:
                y = jnp.where(y >= 0, y, neg_slope * y)    # LeakyReLU (f32 epilogue)
                h = y.astype(jnp.bfloat16)
            else:
                o_ref[...] = y.astype(o_ref.dtype)         # logits (bf16, lane-dense)

    return kernel


def _invariant_spec(shape):
    """Grid-invariant weight block: fetched once, single-buffered (saves VMEM)."""
    nd = len(shape)
    return pl.BlockSpec(shape, lambda i: (0,) * nd, pipeline_mode=pl.Buffered(1))


def cnn_forward(params, x_nchw, *, neg_slope=0.2):
    layers = params["layers"]
    n = x_nchw.shape[0]

    # NHWC flatten (all layer matrices are built in this order) -> bf16 operand.
    x = jnp.transpose(x_nchw, (0, 2, 3, 1)).reshape(n, -1).astype(jnp.bfloat16)
    assert x.shape[1] == params["in_width"]
    in_pad = params["in_pad"]
    if in_pad != x.shape[1]:
        x = jnp.pad(x, ((0, 0), (0, in_pad - x.shape[1])))

    # Batch tiling: multiples of 16 rows (bf16 sublane pack).  For batches big
    # enough to split, pick the tile so the grid has >= 2 parallel steps (so
    # both v7x TensorCores get work); cap at 512 rows (~2-4 MiB working set).
    n16 = _round_up(max(n, 1), 16)
    if n16 <= 32:
        tm = n16
    else:
        tm = min(512, _round_up(-(-n16 // 2), 16))
    n_pad = _round_up(n16, tm)
    if n_pad != n:
        x = jnp.pad(x, ((0, n_pad - n), (0, 0)))
    grid = (n_pad // tm,)

    out_pad = int(layers[-1]["s"].shape[1])

    in_specs = [pl.BlockSpec((tm, in_pad), lambda i: (i, 0))]
    operands = [x]
    meta = []
    for L in layers:
        in_specs.append(_invariant_spec(L["w"].shape))
        in_specs.append(_invariant_spec(L["s"].shape))
        operands += [L["w"], L["s"]]
        meta.append({"kind": L["kind"], "starts": L.get("starts"),
                     "band": L.get("band")})

    # VMEM budget guard (v7x has 64 MiB/core vs 128 MiB on v5e/v6e).
    weight_bytes = sum(int(L["w"].size) * L["w"].dtype.itemsize +
                       int(L["s"].size) * L["s"].dtype.itemsize for L in layers)
    inter_bytes = sum(tm * int(L["s"].shape[1]) * 4 for L in layers)
    vmem_est = weight_bytes + 2 * tm * in_pad * 2 + 2 * tm * out_pad * 2 + inter_bytes
    budget = 48 * 1024 * 1024
    # TODO(synk): for much larger inputs, K-tile the first conv matmul over a
    # grid axis (f32 accumulator + pl.when init/finalize) instead of asserting.
    assert vmem_est <= budget, (
        f"fused-CNN working set ~{vmem_est / 2**20:.1f} MiB exceeds the v7x VMEM "
        f"budget ({budget / 2**20:.0f} MiB); shrink the batch tile or K-tile conv1")

    out = pl.pallas_call(
        _make_kernel(meta, neg_slope),
        out_shape=jax.ShapeDtypeStruct((n_pad, out_pad), jnp.bfloat16),
        grid=grid,
        in_specs=in_specs,
        out_specs=pl.BlockSpec((tm, out_pad), lambda i: (i, 0)),
        compiler_params=pltpu.CompilerParams(
            dimension_semantics=("parallel",),
            vmem_limit_bytes=budget,
        ),
    )(*operands)
    return out[:n, :params["num_outputs"]].astype(jnp.float32)


# ---------------------------------------------------------------------------
# Host-side (init-time) lowering: conv -> NHWC matmul, BN/bias folding,
# lane-dense padding, K-band compression.
# ---------------------------------------------------------------------------
def _tf_same_pad(size, k, s):
    # TF-"SAME": extra padding goes on the bottom/right.
    out = -(-size // s)
    total = max((out - 1) * s + k - size, 0)
    return total // 2, total - total // 2


def _conv_to_dense_nhwc(w, h_in, w_in, stride):
    """Dense matrix of a strided tf_same conv, NHWC flatten on input and output."""
    c_out, c_in, k, _ = w.shape
    pt, _ = _tf_same_pad(h_in, k, stride)
    pw, _ = _tf_same_pad(w_in, k, stride)
    h_out = -(-h_in // stride)
    w_out = -(-w_in // stride)
    m = np.zeros((h_in * w_in * c_in, h_out * w_out * c_out), np.float32)
    ci = np.arange(c_in)
    co = np.arange(c_out)
    for oh in range(h_out):
        for ow in range(w_out):
            cols = (oh * w_out + ow) * c_out + co
            for di in range(k):
                hi = oh * stride + di - pt
                if hi < 0 or hi >= h_in:
                    continue
                for dj in range(k):
                    wi = ow * stride + dj - pw
                    if wi < 0 or wi >= w_in:
                        continue
                    rows = (hi * w_in + wi) * c_in + ci
                    m[np.ix_(rows, cols)] = w[:, :, di, dj].T   # (c_in, c_out) block
    return m, h_out, w_out


def _bn_fold(gamma, beta, mean, var, eps=1e-5):
    scale = gamma / np.sqrt(var + eps)
    return scale, beta - mean * scale


def _band_matrix(m_pad):
    """K-compress a padded (K_pad, N_pad) layer matrix: for every 128-wide column
    block keep only a common-width, 128-aligned row band covering its non-zeros.
    Returns (starts, band, blocks[nb, band, 128]) or None if not usefully banded."""
    k_pad, n_pad = m_pad.shape
    n_blocks = n_pad // 128
    ranges = []
    for b in range(n_blocks):
        nz = np.nonzero(np.any(m_pad[:, b * 128:(b + 1) * 128] != 0, axis=1))[0]
        ranges.append((int(nz[0]), int(nz[-1]) + 1) if nz.size else (0, 0))
    band = 128
    for lo, hi in ranges:
        band = max(band, _round_up(hi - (lo // 128) * 128, 128))
    if band >= k_pad:
        return None                        # no savings -> keep the dense matmul
    starts, blocks = [], []
    for b, (lo, hi) in enumerate(ranges):
        s = min((lo // 128) * 128, k_pad - band)
        if s < 0 or hi > s + band:
            return None
        starts.append(s)
        blocks.append(m_pad[s:s + band, b * 128:(b + 1) * 128])
    return tuple(starts), band, np.stack(blocks)


def init_params(key, input_size, channels, kernel_sizes, strides,
                neurons_linear, num_outputs):
    c0, h0, w0 = input_size
    mats = []      # (dense f32 matrix (K, N), per-column shift (N,)), NHWC order
    raw = {"convs": [], "fc1": None, "fc2": None}

    c_prev, hh, ww = c0, h0, w0
    for k_sz, stride, c_out in zip(kernel_sizes, strides, channels):
        key, k1, k2, k3, k4, k5, k6 = jax.random.split(key, 7)
        wconv = 0.1 * jax.random.normal(k1, (c_out, c_prev, k_sz, k_sz), jnp.float32)
        b = 0.1 * jax.random.normal(k2, (c_out,), jnp.float32)
        gamma = 1.0 + 0.1 * jax.random.normal(k3, (c_out,), jnp.float32)
        beta = 0.1 * jax.random.normal(k4, (c_out,), jnp.float32)
        mean = 0.1 * jax.random.normal(k5, (c_out,), jnp.float32)
        var = 0.5 + jnp.abs(0.1 * jax.random.normal(k6, (c_out,), jnp.float32))
        raw["convs"].append((wconv, b, gamma, beta, mean, var, stride))

        scale, shift_bn = _bn_fold(np.asarray(gamma), np.asarray(beta),
                                   np.asarray(mean), np.asarray(var))
        m, ho, wo = _conv_to_dense_nhwc(np.asarray(wconv), hh, ww, stride)
        m = m * np.tile(scale, ho * wo)[None, :]                     # fold BN scale
        shift = np.tile(np.asarray(b) * scale + shift_bn, ho * wo)   # bias + BN shift
        mats.append((m, shift))
        c_prev, hh, ww = c_out, ho, wo

    num_in = c_prev * hh * ww   # exact flattened size of the conv-stack output

    # Linear + BatchNorm1d.  w1's columns follow torch's NCHW Flatten(); permute
    # them to the NHWC activation order used inside the kernel.
    key, k1, k2, k3, k4, k5, k6 = jax.random.split(key, 7)
    w1 = 0.1 * jax.random.normal(k1, (neurons_linear, num_in), jnp.float32)
    b1 = 0.1 * jax.random.normal(k2, (neurons_linear,), jnp.float32)
    gamma = 1.0 + 0.1 * jax.random.normal(k3, (neurons_linear,), jnp.float32)
    beta = 0.1 * jax.random.normal(k4, (neurons_linear,), jnp.float32)
    mean = 0.1 * jax.random.normal(k5, (neurons_linear,), jnp.float32)
    var = 0.5 + jnp.abs(0.1 * jax.random.normal(k6, (neurons_linear,), jnp.float32))
    raw["fc1"] = (w1, b1, gamma, beta, mean, var)
    scale1, shift1 = _bn_fold(np.asarray(gamma), np.asarray(beta),
                              np.asarray(mean), np.asarray(var))
    perm = np.transpose(np.arange(num_in).reshape(c_prev, hh, ww), (1, 2, 0)).reshape(-1)
    mats.append((np.asarray(w1).T[perm, :] * scale1[None, :],
                 np.asarray(b1) * scale1 + shift1))

    key, k1, k2 = jax.random.split(key, 3)
    w2 = 0.1 * jax.random.normal(k1, (num_outputs, neurons_linear), jnp.float32)
    b2 = 0.1 * jax.random.normal(k2, (num_outputs,), jnp.float32)
    raw["fc2"] = (w2, b2)
    mats.append((np.asarray(w2).T, np.asarray(b2)))

    # Zero-pad every layer to lane-dense (multiple-of-128) K/N, K-compress where
    # the matrix is banded (the strided 3x3 convs are <5% dense), cast to bf16.
    layers = []
    in_pad = _round_up(c0 * h0 * w0, 128)
    prev_pad = in_pad
    for m, shift in mats:
        out_pad = _round_up(m.shape[1], 128)
        mp = np.zeros((prev_pad, out_pad), np.float32)
        mp[:m.shape[0], :m.shape[1]] = m
        sp = np.zeros((1, out_pad), np.float32)
        sp[0, :shift.shape[0]] = shift
        banded = _band_matrix(mp)
        if banded is not None:
            starts, band, blocks = banded
            layers.append({"kind": "banded", "starts": starts, "band": band,
                           "w": jnp.asarray(blocks, dtype=jnp.bfloat16),
                           "s": jnp.asarray(sp, dtype=jnp.float32)})
        else:
            layers.append({"kind": "dense",
                           "w": jnp.asarray(mp, dtype=jnp.bfloat16),
                           "s": jnp.asarray(sp, dtype=jnp.float32)})
        prev_pad = out_pad

    # TODO(synk): eval-mode only -- Dropout is identity and BatchNorm uses
    # running statistics; training-mode behaviour is not implemented.
    return {"layers": layers, "in_width": c0 * h0 * w0, "in_pad": in_pad,
            "num_outputs": num_outputs, "raw": raw}


def cnn_reference(params, x_nchw, *, neg_slope=0.2):
    """Independent pure-JAX f32 reference (XLA conv) of the module's forward."""
    raw = params["raw"]
    h = x_nchw
    for (w, b, gamma, beta, mean, var, stride) in raw["convs"]:
        k = w.shape[-1]
        pt, pb = _tf_same_pad(h.shape[2], k, stride)
        pw, pr = _tf_same_pad(h.shape[3], k, stride)
        h = jax.lax.conv_general_dilated(
            h, w, window_strides=(stride, stride), padding=((pt, pb), (pw, pr)),
            dimension_numbers=("NCHW", "OIHW", "NCHW"))
        h = h + b[None, :, None, None]
        scale = (gamma / jnp.sqrt(var + 1e-5))[None, :, None, None]
        h = (h - mean[None, :, None, None]) * scale + beta[None, :, None, None]
        h = jnp.where(h >= 0, h, neg_slope * h)
    h = h.reshape(h.shape[0], -1)                          # torch NCHW Flatten()
    w1, b1, g1, bt1, mu1, v1 = raw["fc1"]
    h = h @ w1.T + b1
    h = (h - mu1) / jnp.sqrt(v1 + 1e-5) * g1 + bt1
    h = jnp.where(h >= 0, h, neg_slope * h)                # Dropout = identity (eval)
    w2, b2 = raw["fc2"]
    return h @ w2.T + b2


if __name__ == "__main__":
    # Config consistent with the module: input (C,H,W)=(4,16,16), two conv
    # layers (channels 8,8; kernel 3; stride 2), linear 32, outputs 10, batch 2.
    input_size = (4, 16, 16)
    channels = (8, 8)
    kernel_sizes = (3, 3)
    strides = (2, 2)
    neurons_linear = 32
    num_outputs = 10
    batch = 2

    key = jax.random.PRNGKey(0)
    key, pkey, xkey = jax.random.split(key, 3)
    params = init_params(pkey, input_size, channels, kernel_sizes, strides,
                         neurons_linear, num_outputs)
    x = jax.random.normal(xkey, (batch,) + input_size, jnp.float32)

    out = jax.block_until_ready(cnn_forward(params, x, neg_slope=0.2))
    assert out.shape == (batch, num_outputs), out.shape

    # bf16 weights/activations inside the kernel -> compare with loose tolerance.
    ref = jax.block_until_ready(cnn_reference(params, x, neg_slope=0.2))
    np.testing.assert_allclose(np.asarray(out), np.asarray(ref), rtol=0.1, atol=0.1)
    print("KERNEL_OK")
</pallas_src>

<mosaic_0001>
module attributes {stable_mosaic.version = 11 : i64} {
  func.func @kernel(%arg0: i32, %arg1: memref<16x1024xbf16, #tpu.memory_space<vmem>>, %arg2: memref<4x384x128xbf16, #tpu.memory_space<vmem>>, %arg3: memref<1x512xf32, #tpu.memory_space<vmem>>, %arg4: memref<512x128xbf16, #tpu.memory_space<vmem>>, %arg5: memref<1x128xf32, #tpu.memory_space<vmem>>, %arg6: memref<128x128xbf16, #tpu.memory_space<vmem>>, %arg7: memref<1x128xf32, #tpu.memory_space<vmem>>, %arg8: memref<128x128xbf16, #tpu.memory_space<vmem>>, %arg9: memref<1x128xf32, #tpu.memory_space<vmem>>, %arg10: memref<16x128xbf16, #tpu.memory_space<vmem>>) attributes {dimension_semantics = [#tpu.dimension_semantics<parallel>], iteration_bounds = array<i64: 1>, scalar_prefetch = 0 : i64, scratch_operands = 0 : i64, tpu.core_type = #tpu.core_type<tc>, window_params = [{transform_indices = @transform_0, window_bounds = array<i64: 16, 1024>}, {pipeline_mode = #tpu.pipeline_mode<synchronous>, transform_indices = @transform_1, window_bounds = array<i64: 4, 384, 128>}, {pipeline_mode = #tpu.pipeline_mode<synchronous>, transform_indices = @transform_2, window_bounds = array<i64: 1, 512>}, {pipeline_mode = #tpu.pipeline_mode<synchronous>, transform_indices = @transform_3, window_bounds = array<i64: 512, 128>}, {pipeline_mode = #tpu.pipeline_mode<synchronous>, transform_indices = @transform_4, window_bounds = array<i64: 1, 128>}, {pipeline_mode = #tpu.pipeline_mode<synchronous>, transform_indices = @transform_5, window_bounds = array<i64: 128, 128>}, {pipeline_mode = #tpu.pipeline_mode<synchronous>, transform_indices = @transform_6, window_bounds = array<i64: 1, 128>}, {pipeline_mode = #tpu.pipeline_mode<synchronous>, transform_indices = @transform_7, window_bounds = array<i64: 128, 128>}, {pipeline_mode = #tpu.pipeline_mode<synchronous>, transform_indices = @transform_8, window_bounds = array<i64: 1, 128>}, {transform_indices = @transform_9, window_bounds = array<i64: 16, 128>}]} {
    %c0 = arith.constant 0 : index
    %c0_0 = arith.constant 0 : index
    %0 = vector.load %arg1[%c0, %c0_0] : memref<16x1024xbf16, #tpu.memory_space<vmem>>, vector<16x1024xbf16>
    %1 = vector.extract_strided_slice %0 {offsets = [0, 0], sizes = [16, 384], strides = [1, 1]} : vector<16x1024xbf16> to vector<16x384xbf16>
    %c0_1 = arith.constant 0 : index
    %c0_2 = arith.constant 0 : index
    %c0_3 = arith.constant 0 : index
    %2 = vector.load %arg2[%c0_1, %c0_2, %c0_3] : memref<4x384x128xbf16, #tpu.memory_space<vmem>>, vector<1x384x128xbf16>
    %3 = vector.shape_cast %2 : vector<1x384x128xbf16> to vector<384x128xbf16>
    %cst = arith.constant dense<0.000000e+00> : vector<16x128xf32>
    %4 = tpu.matmul %1, %3, %cst {dimension_numbers = #tpu.dot_dimension_numbers<[1], [0], [0], [1], [0, 0, 1, 1], [], []>} : vector<16x384xbf16>, vector<384x128xbf16>, vector<16x128xf32> -> vector<16x128xf32>
    %5 = vector.extract_strided_slice %0 {offsets = [0, 256], sizes = [16, 384], strides = [1, 1]} : vector<16x1024xbf16> to vector<16x384xbf16>
    %c1 = arith.constant 1 : index
    %c0_4 = arith.constant 0 : index
    %c0_5 = arith.constant 0 : index
    %6 = vector.load %arg2[%c1, %c0_4, %c0_5] : memref<4x384x128xbf16, #tpu.memory_space<vmem>>, vector<1x384x128xbf16>
    %7 = vector.shape_cast %6 : vector<1x384x128xbf16> to vector<384x128xbf16>
    %cst_6 = arith.constant dense<0.000000e+00> : vector<16x128xf32>
    %8 = tpu.matmul %5, %7, %cst_6 {dimension_numbers = #tpu.dot_dimension_numbers<[1], [0], [0], [1], [0, 0, 1, 1], [], []>} : vector<16x384xbf16>, vector<384x128xbf16>, vector<16x128xf32> -> vector<16x128xf32>
    %9 = vector.extract_strided_slice %0 {offsets = [0, 512], sizes = [16, 384], strides = [1, 1]} : vector<16x1024xbf16> to vector<16x384xbf16>
    %c2 = arith.constant 2 : index
    %c0_7 = arith.constant 0 : index
    %c0_8 = arith.constant 0 : index
    %10 = vector.load %arg2[%c2, %c0_7, %c0_8] : memref<4x384x128xbf16, #tpu.memory_space<vmem>>, vector<1x384x128xbf16>
    %11 = vector.shape_cast %10 : vector<1x384x128xbf16> to vector<384x128xbf16>
    %cst_9 = arith.constant dense<0.000000e+00> : vector<16x128xf32>
    %12 = tpu.matmul %9, %11, %cst_9 {dimension_numbers = #tpu.dot_dimension_numbers<[1], [0], [0], [1], [0, 0, 1, 1], [], []>} : vector<16x384xbf16>, vector<384x128xbf16>, vector<16x128xf32> -> vector<16x128xf32>
    %13 = vector.extract_strided_slice %0 {offsets = [0, 640], sizes = [16, 384], strides = [1, 1]} : vector<16x1024xbf16> to vector<16x384xbf16>
    %c3 = arith.constant 3 : index
    %c0_10 = arith.constant 0 : index
    %c0_11 = arith.constant 0 : index
    %14 = vector.load %arg2[%c3, %c0_10, %c0_11] : memref<4x384x128xbf16, #tpu.memory_space<vmem>>, vector<1x384x128xbf16>
    %15 = vector.shape_cast %14 : vector<1x384x128xbf16> to vector<384x128xbf16>
    %cst_12 = arith.constant dense<0.000000e+00> : vector<16x128xf32>
    %16 = tpu.matmul %13, %15, %cst_12 {dimension_numbers = #tpu.dot_dimension_numbers<[1], [0], [0], [1], [0, 0, 1, 1], [], []>} : vector<16x384xbf16>, vector<384x128xbf16>, vector<16x128xf32> -> vector<16x128xf32>
    %17 = tpu.concatenate %4, %8, %12, %16 in 1 : vector<16x128xf32>, vector<16x128xf32>, vector<16x128xf32>, vector<16x128xf32> -> vector<16x512xf32>
    %c0_13 = arith.constant 0 : index
    %c0_14 = arith.constant 0 : index
    %18 = vector.load %arg3[%c0_13, %c0_14] : memref<1x512xf32, #tpu.memory_space<vmem>>, vector<1x512xf32>
    %19 = vector.broadcast %18 : vector<1x512xf32> to vector<16x512xf32>
    %20 = arith.addf %17, %19 : vector<16x512xf32>
    %cst_15 = arith.constant 0.000000e+00 : f32
    %21 = vector.broadcast %cst_15 : f32 to vector<16x512xf32>
    %22 = arith.cmpf oge, %20, %21 : vector<16x512xf32>
    %cst_16 = arith.constant 2.000000e-01 : f32
    %23 = vector.broadcast %cst_16 : f32 to vector<16x512xf32>
    %24 = arith.mulf %23, %20 : vector<16x512xf32>
    %25 = arith.select %22, %20, %24 : vector<16x512xi1>, vector<16x512xf32>
    %26 = arith.truncf %25 : vector<16x512xf32> to vector<16x512xbf16>
    %c0_17 = arith.constant 0 : index
    %c0_18 = arith.constant 0 : index
    %27 = vector.load %arg4[%c0_17, %c0_18] : memref<512x128xbf16, #tpu.memory_space<vmem>>, vector<512x128xbf16>
    %cst_19 = arith.constant dense<0.000000e+00> : vector<16x128xf32>
    %28 = tpu.matmul %26, %27, %cst_19 {dimension_numbers = #tpu.dot_dimension_numbers<[1], [0], [0], [1], [0, 0, 1, 1], [], []>} : vector<16x512xbf16>, vector<512x128xbf16>, vector<16x128xf32> -> vector<16x128xf32>
    %c0_20 = arith.constant 0 : index
    %c0_21 = arith.constant 0 : index
    %29 = vector.load %arg5[%c0_20, %c0_21] : memref<1x128xf32, #tpu.memory_space<vmem>>, vector<1x128xf32>
    %30 = vector.broadcast %29 : vector<1x128xf32> to vector<16x128xf32>
    %31 = arith.addf %28, %30 : vector<16x128xf32>
    %cst_22 = arith.constant 0.000000e+00 : f32
    %32 = vector.broadcast %cst_22 : f32 to vector<16x128xf32>
    %33 = arith.cmpf oge, %31, %32 : vector<16x128xf32>
    %cst_23 = arith.constant 2.000000e-01 : f32
    %34 = vector.broadcast %cst_23 : f32 to vector<16x128xf32>
    %35 = arith.mulf %34, %31 : vector<16x128xf32>
    %36 = arith.select %33, %31, %35 : vector<16x128xi1>, vector<16x128xf32>
    %37 = arith.truncf %36 : vector<16x128xf32> to vector<16x128xbf16>
    %c0_24 = arith.constant 0 : index
    %c0_25 = arith.constant 0 : index
    %38 = vector.load %arg6[%c0_24, %c0_25] : memref<128x128xbf16, #tpu.memory_space<vmem>>, vector<128x128xbf16>
    %cst_26 = arith.constant dense<0.000000e+00> : vector<16x128xf32>
    %39 = tpu.matmul %37, %38, %cst_26 {dimension_numbers = #tpu.dot_dimension_numbers<[1], [0], [0], [1], [0, 0, 1, 1], [], []>} : vector<16x128xbf16>, vector<128x128xbf16>, vector<16x128xf32> -> vector<16x128xf32>
    %c0_27 = arith.constant 0 : index
    %c0_28 = arith.constant 0 : index
    %40 = vector.load %arg7[%c0_27, %c0_28] : memref<1x128xf32, #tpu.memory_space<vmem>>, vector<1x128xf32>
    %41 = vector.broadcast %40 : vector<1x128xf32> to vector<16x128xf32>
    %42 = arith.addf %39, %41 : vector<16x128xf32>
    %cst_29 = arith.constant 0.000000e+00 : f32
    %43 = vector.broadcast %cst_29 : f32 to vector<16x128xf32>
    %44 = arith.cmpf oge, %42, %43 : vector<16x128xf32>
    %cst_30 = arith.constant 2.000000e-01 : f32
    %45 = vector.broadcast %cst_30 : f32 to vector<16x128xf32>
    %46 = arith.mulf %45, %42 : vector<16x128xf32>
    %47 = arith.select %44, %42, %46 : vector<16x128xi1>, vector<16x128xf32>
    %48 = arith.truncf %47 : vector<16x128xf32> to vector<16x128xbf16>
    %c0_31 = arith.constant 0 : index
    %c0_32 = arith.constant 0 : index
    %49 = vector.load %arg8[%c0_31, %c0_32] : memref<128x128xbf16, #tpu.memory_space<vmem>>, vector<128x128xbf16>
    %cst_33 = arith.constant dense<0.000000e+00> : vector<16x128xf32>
    %50 = tpu.matmul %48, %49, %cst_33 {dimension_numbers = #tpu.dot_dimension_numbers<[1], [0], [0], [1], [0, 0, 1, 1], [], []>} : vector<16x128xbf16>, vector<128x128xbf16>, vector<16x128xf32> -> vector<16x128xf32>
    %c0_34 = arith.constant 0 : index
    %c0_35 = arith.constant 0 : index
    %51 = vector.load %arg9[%c0_34, %c0_35] : memref<1x128xf32, #tpu.memory_space<vmem>>, vector<1x128xf32>
    %52 = vector.broadcast %51 : vector<1x128xf32> to vector<16x128xf32>
    %53 = arith.addf %50, %52 : vector<16x128xf32>
    %54 = arith.truncf %53 : vector<16x128xf32> to vector<16x128xbf16>
    %c0_36 = arith.constant 0 : index
    %c0_37 = arith.constant 0 : index
    %55 = vector.load %arg10[%c0_36, %c0_37] : memref<16x128xbf16, #tpu.memory_space<vmem>>, vector<16x128xbf16>
    tpu.vector_store %arg10[%c0_36, %c0_37], %54 {strides = array<i32>} : memref<16x128xbf16, #tpu.memory_space<vmem>>, vector<16x128xbf16>,
    return
  }
  func.func @transform_0(%arg0: i32) -> (i32, i32) {
    %c0_i32 = arith.constant 0 : i32
    %c0_i32_0 = arith.constant 0 : i32
    return %arg0, %c0_i32 : i32, i32
  }
  func.func @transform_1(%arg0: i32) -> (i32, i32, i32) {
    %c0_i32 = arith.constant 0 : i32
    %c0_i32_0 = arith.constant 0 : i32
    %c0_i32_1 = arith.constant 0 : i32
    %c0_i32_2 = arith.constant 0 : i32
    return %c0_i32, %c0_i32_0, %c0_i32_1 : i32, i32, i32
  }
  func.func @transform_2(%arg0: i32) -> (i32, i32) {
    %c0_i32 = arith.constant 0 : i32
    %c0_i32_0 = arith.constant 0 : i32
    %c0_i32_1 = arith.constant 0 : i32
    return %c0_i32, %c0_i32_0 : i32, i32
  }
  func.func @transform_3(%arg0: i32) -> (i32, i32) {
    %c0_i32 = arith.constant 0 : i32
    %c0_i32_0 = arith.constant 0 : i32
    %c0_i32_1 = arith.constant 0 : i32
    return %c0_i32, %c0_i32_0 : i32, i32
  }
  func.func @transform_4(%arg0: i32) -> (i32, i32) {
    %c0_i32 = arith.constant 0 : i32
    %c0_i32_0 = arith.constant 0 : i32
    %c0_i32_1 = arith.constant 0 : i32
    return %c0_i32, %c0_i32_0 : i32, i32
  }
  func.func @transform_5(%arg0: i32) -> (i32, i32) {
    %c0_i32 = arith.constant 0 : i32
    %c0_i32_0 = arith.constant 0 : i32
    %c0_i32_1 = arith.constant 0 : i32
    return %c0_i32, %c0_i32_0 : i32, i32
  }
  func.func @transform_6(%arg0: i32) -> (i32, i32) {
    %c0_i32 = arith.constant 0 : i32
    %c0_i32_0 = arith.constant 0 : i32
    %c0_i32_1 = arith.constant 0 : i32
    return %c0_i32, %c0_i32_0 : i32, i32
  }
  func.func @transform_7(%arg0: i32) -> (i32, i32) {
    %c0_i32 = arith.constant 0 : i32
    %c0_i32_0 = arith.constant 0 : i32
    %c0_i32_1 = arith.constant 0 : i32
    return %c0_i32, %c0_i32_0 : i32, i32
  }
  func.func @transform_8(%arg0: i32) -> (i32, i32) {
    %c0_i32 = arith.constant 0 : i32
    %c0_i32_0 = arith.constant 0 : i32
    %c0_i32_1 = arith.constant 0 : i32
    return %c0_i32, %c0_i32_0 : i32, i32
  }
  func.func @transform_9(%arg0: i32) -> (i32, i32) {
    %c0_i32 = arith.constant 0 : i32
    %c0_i32_0 = arith.constant 0 : i32
    return %arg0, %c0_i32 : i32, i32
  }
}

</mosaic_0001>

<llo_original>
// kernel: tpu_custom_call.1
$region0: #{tpu_custom_call.1}
  #allocation0 [shape = 'u32[]', space=smem, size = 0x4, offset = 0x4, fixed_abs, tag = 'smem constant byte address 0x4 - core index']
  #allocation1 [shape = 'u32[144,128]{1,0:T(1,128)}', space=vmem, size = 0x12000, scoped, tag = 'internal scratch']
  %s0 = inlined_call_operand.hbm [shape: bf16[16,1024], index: 0, kind: input, shape index: {}]
  %s1 = inlined_call_operand.hbm [shape: bf16[4,384,128], index: 1, kind: input, shape index: {}]
  %s2 = inlined_call_operand.vmem [shape: f32[1,512], index: 2, kind: input, shape index: {}]
  %s3 = inlined_call_operand.hbm [shape: bf16[512,128], index: 3, kind: input, shape index: {}]
  %s4 = inlined_call_operand.vmem [shape: f32[1,128], index: 4, kind: input, shape index: {}]
  %s5 = inlined_call_operand.hbm [shape: bf16[128,128], index: 5, kind: input, shape index: {}]
  %s6 = inlined_call_operand.vmem [shape: f32[1,128], index: 6, kind: input, shape index: {}]
  %s7 = inlined_call_operand.hbm [shape: bf16[128,128], index: 7, kind: input, shape index: {}]
  %s8 = inlined_call_operand.vmem [shape: f32[1,128], index: 8, kind: input, shape index: {}]
  %s9 = inlined_call_operand.hbm [shape: bf16[16,128], index: 9, kind: output, shape index: {}]
  %s10 = sld [smem:[#allocation0]]
  $region66: #{tpu_custom_call.1} parent=0
    _
  %s12 = ssub.s32 1, %s10
  %s13 = scalar_select 0, %s12, %s10
  $region1: #{tpu_custom_call.1} parent=0
    #allocation2 [shape = 'u8[32768]{0}', space=vmem, size = 0x8000, scoped, tag = 'input window, operand 0, single buffered']
    #allocation3 [shape = 's32[1]{0}', space=sflag, size = 0x4, scoped, tag = 'scoped memory for tpu_custom_call.1']
    #allocation4 [shape = 's32[1]{0}', space=sflag, size = 0x4, scoped, tag = 'scoped memory for tpu_custom_call.1']
    #allocation5 [shape = 'u8[393216]{0}', space=vmem, size = 0x60000, scoped, tag = 'input window, operand 1, single buffered']
    #allocation6 [shape = 's32[1]{0}', space=sflag, size = 0x4, scoped, tag = 'scoped memory for tpu_custom_call.1']
    #allocation7 [shape = 'u8[131072]{0}', space=vmem, size = 0x20000, scoped, tag = 'input window, operand 3, single buffered']
    #allocation8 [shape = 'u8[32768]{0}', space=vmem, size = 0x8000, scoped, tag = 'input window, operand 5, single buffered']
    #allocation9 [shape = 's32[1]{0}', space=sflag, size = 0x4, scoped, tag = 'scoped memory for tpu_custom_call.1']
    #allocation10 [shape = 'u8[32768]{0}', space=vmem, size = 0x8000, scoped, tag = 'input window, operand 7, single buffered']
    #allocation11 [shape = 'u8[4096]{0}', space=vmem, size = 0x1000, scoped, tag = 'output window, operand 0, single buffered']
    %14 = vsyncpa [#allocation3], 0
    %15 = vsyncpa [#allocation6], 0
    %16 = vsyncpa [#allocation9], 0
    %17 = vsyncpa [#allocation4], 0
    // Predicated region
    $region2: #{tpu_custom_call.1} parent=1 // pred_check
      _
    $region3: #{tpu_custom_call.1} parent=1 // pred_check_branch
      %19 = sbr.rel (0) target = $region5
    $region4: #{tpu_custom_call.1} parent=1 // pred_region
      %s21 = ssub.s32 1024, 1024
      %22 = vsyncadd [#allocation3], %s21
      %s23 = sshll.u32 [#allocation2], 4
      %s24 = int_to_ptr.vmem [resolvable:$true] %s23
      %29 = dma.hbm_to_vmem [thread:$0]  %s0, 1024, %s24, [#allocation3], 512, 512, 32
    $region5: #{tpu_custom_call.1} parent=1 // pred_fallthru
      _
    // Predicated region
    $region6: #{tpu_custom_call.1} parent=1 // pred_check
      _
    $region7: #{tpu_custom_call.1} parent=1 // pred_check_branch
      %31 = sbr.rel (0) target = $region9
    $region8: #{tpu_custom_call.1} parent=1 // pred_region
      %s33 = ssub.s32 12288, 12288
      %34 = vsyncadd [#allocation6], %s33
      %s35 = sshll.u32 [#allocation5], 4
      %s36 = int_to_ptr.vmem [resolvable:$true] %s35
      %41 = dma.hbm_to_vmem [thread:$0]  %s1, 12288, %s36, [#allocation6], 64, 64, 4
    $region9: #{tpu_custom_call.1} parent=1 // pred_fallthru
      _
    // Predicated region
    $region10: #{tpu_custom_call.1} parent=1 // pred_check
      _
    $region11: #{tpu_custom_call.1} parent=1 // pred_check_branch
      %43 = sbr.rel (0) target = $region13
    $region12: #{tpu_custom_call.1} parent=1 // pred_region
      _
    $region13: #{tpu_custom_call.1} parent=1 // pred_fallthru
      _
    // Predicated region
    $region14: #{tpu_custom_call.1} parent=1 // pred_check
      _
    $region15: #{tpu_custom_call.1} parent=1 // pred_check_branch
      %45 = sbr.rel (0) target = $region17
    $region16: #{tpu_custom_call.1} parent=1 // pred_region
      %s47 = ssub.s32 4096, 4096
      %48 = vsyncadd [#allocation6], %s47
      %s49 = sshll.u32 [#allocation7], 4
      %s50 = int_to_ptr.vmem [resolvable:$true] %s49
      %55 = dma.hbm_to_vmem [thread:$0]  %s3, 4096, %s50, [#allocation6], 64, 64, 4
    $region17: #{tpu_custom_call.1} parent=1 // pred_fallthru
      _
    // Predicated region
    $region18: #{tpu_custom_call.1} parent=1 // pred_check
      _
    $region19: #{tpu_custom_call.1} parent=1 // pred_check_branch
      %57 = sbr.rel (0) target = $region21
    $region20: #{tpu_custom_call.1} parent=1 // pred_region
      _
    $region21: #{tpu_custom_call.1} parent=1 // pred_fallthru
      _
    // Predicated region
    $region22: #{tpu_custom_call.1} parent=1 // pred_check
      _
    $region23: #{tpu_custom_call.1} parent=1 // pred_check_branch
      %59 = sbr.rel (0) target = $region25
    $region24: #{tpu_custom_call.1} parent=1 // pred_region
      %s61 = ssub.s32 1024, 1024
      %62 = vsyncadd [#allocation9], %s61
      %s63 = sshll.u32 [#allocation8], 4
      %s64 = int_to_ptr.vmem [resolvable:$true] %s63
      %69 = dma.hbm_to_vmem [thread:$0]  %s5, 1024, %s64, [#allocation9], 64, 64, 4
    $region25: #{tpu_custom_call.1} parent=1 // pred_fallthru
      _
    // Predicated region
    $region26: #{tpu_custom_call.1} parent=1 // pred_check
      _
    $region27: #{tpu_custom_call.1} parent=1 // pred_check_branch
      %71 = sbr.rel (0) target = $region29
    $region28: #{tpu_custom_call.1} parent=1 // pred_region
      _
    $region29: #{tpu_custom_call.1} parent=1 // pred_fallthru
      _
    // Predicated region
    $region30: #{tpu_custom_call.1} parent=1 // pred_check
      _
    $region31: #{tpu_custom_call.1} parent=1 // pred_check_branch
      %73 = sbr.rel (0) target = $region33
    $region32: #{tpu_custom_call.1} parent=1 // pred_region
      %s75 = ssub.s32 1024, 1024
      %76 = vsyncadd [#allocation9], %s75
      %s77 = sshll.u32 [#allocation10], 4
      %s78 = int_to_ptr.vmem [resolvable:$true] %s77
      %83 = dma.hbm_to_vmem [thread:$0]  %s7, 1024, %s78, [#allocation9], 64, 64, 4
    $region33: #{tpu_custom_call.1} parent=1 // pred_fallthru
      _
    // Predicated region
    $region34: #{tpu_custom_call.1} parent=1 // pred_check
      _
    $region35: #{tpu_custom_call.1} parent=1 // pred_check_branch
      %85 = sbr.rel (0) target = $region37
    $region36: #{tpu_custom_call.1} parent=1 // pred_region
      _
    $region37: #{tpu_custom_call.1} parent=1 // pred_fallthru
      _
    // Predicated region
    $region38: #{tpu_custom_call.1} parent=1 // pred_check
      _
    $region39: #{tpu_custom_call.1} parent=1 // pred_check_branch
      %87 = sbr.rel (0) target = $region41
    $region40: #{tpu_custom_call.1} parent=1 // pred_region
      %88 = dma.done [#allocation3], 1024
    $region41: #{tpu_custom_call.1} parent=1 // pred_fallthru
      _
    // Predicated region
    $region42: #{tpu_custom_call.1} parent=1 // pred_check
      _
    $region43: #{tpu_custom_call.1} parent=1 // pred_check_branch
      %90 = sbr.rel (0) target = $region45
    $region44: #{tpu_custom_call.1} parent=1 // pred_region
      %91 = dma.done [#allocation6], 12288
    $region45: #{tpu_custom_call.1} parent=1 // pred_fallthru
      _
    // Predicated region
    $region46: #{tpu_custom_call.1} parent=1 // pred_check
      _
    $region47: #{tpu_custom_call.1} parent=1 // pred_check_branch
      %93 = sbr.rel (0) target = $region49
    $region48: #{tpu_custom_call.1} parent=1 // pred_region
      %94 = dma.done [#allocation6], 4096
    $region49: #{tpu_custom_call.1} parent=1 // pred_fallthru
      _
    // Predicated region
    $region50: #{tpu_custom_call.1} parent=1 // pred_check
      _
    $region51: #{tpu_custom_call.1} parent=1 // pred_check_branch
      %96 = sbr.rel (0) target = $region53
    $region52: #{tpu_custom_call.1} parent=1 // pred_region
      %97 = dma.done [#allocation9], 1024
    $region53: #{tpu_custom_call.1} parent=1 // pred_fallthru
      _
    // Predicated region
    $region54: #{tpu_custom_call.1} parent=1 // pred_check
      _
    $region55: #{tpu_custom_call.1} parent=1 // pred_check_branch
      %99 = sbr.rel (0) target = $region57
    $region56: #{tpu_custom_call.1} parent=1 // pred_region
      %100 = dma.done [#allocation9], 1024
    $region57: #{tpu_custom_call.1} parent=1 // pred_fallthru
      _
    %v102 = vld [vmem:[#allocation2] sm:$0xff]
    %v103 = vld [vmem:[#allocation2 + $0x8] sm:$0xff]
    %v104 = vld [vmem:[#allocation2 + $0x10] sm:$0xff]
    %v105 = vld [vmem:[#allocation2 + $0x18] sm:$0xff]
    %v106 = vld [vmem:[#allocation2 + $0x20] sm:$0xff]
    %v107 = vld [vmem:[#allocation2 + $0x28] sm:$0xff]
    %v108 = vld [vmem:[#allocation2 + $0x30] sm:$0xff]
    %v109 = vld [vmem:[#allocation2 + $0x38] sm:$0xff]
    %v110 = vld [vmem:[#allocation5] sm:$0xf]
    %v111 = vld [vmem:[#allocation5 + $0x4] sm:$0xf]
    %v112 = vld [vmem:[#allocation5 + $0x8] sm:$0xf]
    %v113 = vld [vmem:[#allocation5 + $0xc] sm:$0xf]
    %v114 = vld [vmem:[#allocation5 + $0x10] sm:$0xf]
    %v115 = vld [vmem:[#allocation5 + $0x14] sm:$0xf]
    %v116 = vld [vmem:[#allocation5 + $0x18] sm:$0xf]
    %v117 = vld [vmem:[#allocation5 + $0x1c] sm:$0xf]
    %v118 = vld [vmem:[#allocation5 + $0x20] sm:$0xf]
    %v119 = vld [vmem:[#allocation5 + $0x24] sm:$0xf]
    %v120 = vld [vmem:[#allocation5 + $0x28] sm:$0xf]
    %v121 = vld [vmem:[#allocation5 + $0x2c] sm:$0xf]
    %v122 = vld [vmem:[#allocation5 + $0x30] sm:$0xf]
    %v123 = vld [vmem:[#allocation5 + $0x34] sm:$0xf]
    %v124 = vld [vmem:[#allocation5 + $0x38] sm:$0xf]
    %v125 = vld [vmem:[#allocation5 + $0x3c] sm:$0xf]
    %v126 = vld [vmem:[#allocation5 + $0x40] sm:$0xf]
    %v127 = vld [vmem:[#allocation5 + $0x44] sm:$0xf]
    %v128 = vld [vmem:[#allocation5 + $0x48] sm:$0xf]
    %v129 = vld [vmem:[#allocation5 + $0x4c] sm:$0xf]
    %v130 = vld [vmem:[#allocation5 + $0x50] sm:$0xf]
    %v131 = vld [vmem:[#allocation5 + $0x54] sm:$0xf]
    %v132 = vld [vmem:[#allocation5 + $0x58] sm:$0xf]
    %v133 = vld [vmem:[#allocation5 + $0x5c] sm:$0xf]
    %v134 = vld [vmem:[#allocation5 + $0x60] sm:$0xf]
    %v135 = vld [vmem:[#allocation5 + $0x64] sm:$0xf]
    %v136 = vld [vmem:[#allocation5 + $0x68] sm:$0xf]
    %v137 = vld [vmem:[#allocation5 + $0x6c] sm:$0xf]
    %v138 = vld [vmem:[#allocation5 + $0x70] sm:$0xf]
    %v139 = vld [vmem:[#allocation5 + $0x74] sm:$0xf]
    %v140 = vld [vmem:[#allocation5 + $0x78] sm:$0xf]
    %v141 = vld [vmem:[#allocation5 + $0x7c] sm:$0xf]
    %v142 = vld [vmem:[#allocation5 + $0x80] sm:$0xf]
    %v143 = vld [vmem:[#allocation5 + $0x84] sm:$0xf]
    %v144 = vld [vmem:[#allocation5 + $0x88] sm:$0xf]
    %v145 = vld [vmem:[#allocation5 + $0x8c] sm:$0xf]
    %v146 = vld [vmem:[#allocation5 + $0x90] sm:$0xf]
    %v147 = vld [vmem:[#allocation5 + $0x94] sm:$0xf]
    %v148 = vld [vmem:[#allocation5 + $0x98] sm:$0xf]
    %v149 = vld [vmem:[#allocation5 + $0x9c] sm:$0xf]
    %v150 = vld [vmem:[#allocation5 + $0xa0] sm:$0xf]
    %v151 = vld [vmem:[#allocation5 + $0xa4] sm:$0xf]
    %v152 = vld [vmem:[#allocation5 + $0xa8] sm:$0xf]
    %v153 = vld [vmem:[#allocation5 + $0xac] sm:$0xf]
    %v154 = vld [vmem:[#allocation5 + $0xb0] sm:$0xf]
    %v155 = vld [vmem:[#allocation5 + $0xb4] sm:$0xf]
    %v156 = vld [vmem:[#allocation5 + $0xb8] sm:$0xf]
    %v157 = vld [vmem:[#allocation5 + $0xbc] sm:$0xf]
    %v162 = vunpack.c.l.b16 %v102
    %v163 = vunpack.c.h.b16 %v102
    %v164 = vunpack.c.l.b16 %v103
    %v165 = vunpack.c.l.b16 %v106
    %v166 = vunpack.c.h.b16 %v106
    %v167 = vunpack.c.l.b16 %v107
    %v168 = vpack.c.b16 %v165, %v162
    %v169 = vpack.c.b16 %v166, %v163
    %v170 = vpack.c.b16 %v167, %v164
    %v222 = vunpack.c.l.b16 %v110
    %v223 = vunpack.c.l.b16 %v111
    %v224 = vunpack.c.l.b16 %v112
    %v225 = vunpack.c.l.b16 %v113
    %v226 = vunpack.c.l.b16 %v114
    %v227 = vunpack.c.l.b16 %v115
    %v228 = vunpack.c.l.b16 %v116
    %v229 = vunpack.c.l.b16 %v117
    %v230 = vunpack.c.l.b16 %v118
    %v231 = vunpack.c.l.b16 %v119
    %v232 = vunpack.c.l.b16 %v120
    %v233 = vunpack.c.l.b16 %v121
    %v234 = vunpack.c.l.b16 %v122
    %v235 = vunpack.c.l.b16 %v123
    %v236 = vunpack.c.l.b16 %v124
    %v237 = vunpack.c.l.b16 %v125
    %v238 = vunpack.c.l.b16 %v126
    %v239 = vunpack.c.l.b16 %v127
    %v240 = vunpack.c.l.b16 %v128
    %v241 = vunpack.c.l.b16 %v129
    %v242 = vunpack.c.l.b16 %v130
    %v243 = vunpack.c.l.b16 %v131
    %v244 = vunpack.c.l.b16 %v132
    %v245 = vunpack.c.l.b16 %v133
    %v246 = vunpack.c.l.b16 %v134
    %v247 = vunpack.c.l.b16 %v135
    %v248 = vunpack.c.l.b16 %v136
    %v249 = vunpack.c.l.b16 %v137
    %v250 = vunpack.c.l.b16 %v138
    %v251 = vunpack.c.l.b16 %v139
    %v252 = vunpack.c.l.b16 %v140
    %v253 = vunpack.c.l.b16 %v141
    %v254 = vunpack.c.l.b16 %v142
    %v255 = vunpack.c.l.b16 %v143
    %v256 = vunpack.c.l.b16 %v144
    %v257 = vunpack.c.l.b16 %v145
    %v258 = vunpack.c.l.b16 %v146
    %v259 = vunpack.c.l.b16 %v147
    %v260 = vunpack.c.l.b16 %v148
    %v261 = vunpack.c.l.b16 %v149
    %v262 = vunpack.c.l.b16 %v150
    %v263 = vunpack.c.l.b16 %v151
    %v264 = vunpack.c.l.b16 %v152
    %v265 = vunpack.c.l.b16 %v153
    %v266 = vunpack.c.l.b16 %v154
    %v267 = vunpack.c.l.b16 %v155
    %v268 = vunpack.c.l.b16 %v156
    %v269 = vunpack.c.l.b16 %v157
    %v270 = vpack.c.b16 %v223, %v222
    %v271 = vpack.c.b16 %v225, %v224
    %v272 = vpack.c.b16 %v227, %v226
    %v273 = vpack.c.b16 %v229, %v228
    %v274 = vpack.c.b16 %v231, %v230
    %v275 = vpack.c.b16 %v233, %v232
    %v276 = vpack.c.b16 %v235, %v234
    %v277 = vpack.c.b16 %v237, %v236
    %v278 = vpack.c.b16 %v239, %v238
    %v279 = vpack.c.b16 %v241, %v240
    %v280 = vpack.c.b16 %v243, %v242
    %v281 = vpack.c.b16 %v245, %v244
    %v282 = vpack.c.b16 %v247, %v246
    %v283 = vpack.c.b16 %v249, %v248
    %v284 = vpack.c.b16 %v251, %v250
    %v285 = vpack.c.b16 %v253, %v252
    %v286 = vpack.c.b16 %v255, %v254
    %v287 = vpack.c.b16 %v257, %v256
    %v288 = vpack.c.b16 %v259, %v258
    %v289 = vpack.c.b16 %v261, %v260
    %v290 = vpack.c.b16 %v263, %v262
    %v291 = vpack.c.b16 %v265, %v264
    %v292 = vpack.c.b16 %v267, %v266
    %v293 = vpack.c.b16 %v269, %v268
    %318 = vmatprep.subr.bf16.mxu0 0
    %319 = vmatpush1.bf16.msra.mxu0 %v270
    %320 = vmatprep.subr.bf16.mxu0 0
    %321 = vmatpush1.bf16.msra.mxu0 %v271
    %322 = vmatprep.subr.bf16.mxu0 0
    %323 = vmatpush1.bf16.msra.mxu0 %v272
    %324 = vmatprep.subr.bf16.mxu0 0
    %325 = vmatpush1.bf16.msra.mxu0 %v273
    %326 = vmatprep.subr.bf16.mxu0 0
    %327 = vmatpush1.bf16.msra.mxu0 %v274
    %328 = vmatprep.subr.bf16.mxu0 0
    %329 = vmatpush1.bf16.msra.mxu0 %v275
    %330 = vmatprep.subr.bf16.mxu0 0
    %331 = vmatpush1.bf16.msra.mxu0 %v276
    %332 = vmatprep.subr.bf16.mxu0 0
    %333 = vmatpush1.bf16.msra.mxu0 %v277
    %334 = vmatprep.subr.bf16.mxu0 0
    %335 = vmatpush1.bf16.msra.mxu0 %v278
    %336 = vmatprep.subr.bf16.mxu0 0
    %337 = vmatpush1.bf16.msra.mxu0 %v279
    %338 = vmatprep.subr.bf16.mxu0 0
    %339 = vmatpush1.bf16.msra.mxu0 %v280
    %340 = vmatprep.subr.bf16.mxu0 0
    %341 = vmatpush1.bf16.msra.mxu0 %v281
    %342 = vmatprep.subr.bf16.mxu0 0
    %343 = vmatpush1.bf16.msra.mxu0 %v282
    %344 = vmatprep.subr.bf16.mxu0 0
    %345 = vmatpush1.bf16.msra.mxu0 %v283
    %346 = vmatprep.subr.bf16.mxu0 0
    %347 = vmatpush1.bf16.msra.mxu0 %v284
    %348 = vmatprep.subr.bf16.mxu0 0
    %349 = vmatpush1.bf16.msra.mxu0 %v285
    %350 = vmatprep.mubr.bf16.mxu0 %v169
    %351 = vmatmul.mubr.bf16.gmra.mrb[0].mxu0 %v168
    %v352 = vpop.f32.mrb[0].mxu0
    %v353 = vadd.f32 0.0, %v352
    %v354 = vpop.f32.mrb[0].mxu0
    %v355 = vpop.f32.mrb[0].mxu0
    %v356 = vadd.f32 0.0, %v355
    %v357 = vpop.f32.mrb[0].mxu0
    %358 = vdwg.mxu0
    %359 = vmatprep.subr.bf16.mxu0 0
    %360 = vmatpush1.bf16.msra.mxu0 %v286
    %361 = vmatprep.subr.bf16.mxu0 0
    %362 = vmatpush1.bf16.msra.mxu0 %v287
    %363 = vmatprep.subr.bf16.mxu0 0
    %364 = vmatpush1.bf16.msra.mxu0 %v288
    %365 = vmatprep.subr.bf16.mxu0 0
    %366 = vmatpush1.bf16.msra.mxu0 %v289
    %367 = vmatprep.subr.bf16.mxu0 0
    %368 = vmatpush1.bf16.msra.mxu0 %v290
    %369 = vmatprep.subr.bf16.mxu0 0
    %370 = vmatpush1.bf16.msra.mxu0 %v291
    %371 = vmatprep.subr.bf16.mxu0 0
    %372 = vmatpush1.bf16.msra.mxu0 %v292
    %373 = vmatprep.subr.bf16.mxu0 0
    %374 = vmatpush1.bf16.msra.mxu0 %v293
    %375 = vmatprep.subr.bf16.mxu0 0
    %376 = vmatpush1.bf16.msra.mxu0 0
    %377 = vmatprep.subr.bf16.mxu0 0
    %378 = vmatpush1.bf16.msra.mxu0 0
    %379 = vmatprep.subr.bf16.mxu0 0
    %380 = vmatpush1.bf16.msra.mxu0 0
    %381 = vmatprep.subr.bf16.mxu0 0
    %382 = vmatpush1.bf16.msra.mxu0 0
    %383 = vmatprep.subr.bf16.mxu0 0
    %384 = vmatpush1.bf16.msra.mxu0 0
    %385 = vmatprep.subr.bf16.mxu0 0
    %386 = vmatpush1.bf16.msra.mxu0 0
    %387 = vmatprep.subr.bf16.mxu0 0
    %388 = vmatpush1.bf16.msra.mxu0 0
    %389 = vmatprep.subr.bf16.mxu0 0
    %390 = vmatpush1.bf16.msra.mxu0 0
    %391 = vmatprep.mubr.bf16.mxu0 0
    %392 = vmatmul.mubr.bf16.gmra.mrb[0].mxu0 %v170
    %v393 = vpop.f32.mrb[0].mxu0
    %v394 = vadd.f32 %v353, %v393
    %v395 = vpop.f32.mrb[0].mxu0
    %v396 = vpop.f32.mrb[0].mxu0
    %v397 = vadd.f32 %v356, %v396
    %v398 = vpop.f32.mrb[0].mxu0
    %399 = vdwg.mxu0
    %s400 = scalar_lea.vmem [#allocation5], 192
    %v401 = vld [vmem:[%s400] sm:$0xf]
    %v402 = vld [vmem:[%s400 + $0x4] sm:$0xf]
    %v403 = vld [vmem:[%s400 + $0x8] sm:$0xf]
    %v404 = vld [vmem:[%s400 + $0xc] sm:$0xf]
    %v405 = vld [vmem:[%s400 + $0x10] sm:$0xf]
    %v406 = vld [vmem:[%s400 + $0x14] sm:$0xf]
    %v407 = vld [vmem:[%s400 + $0x18] sm:$0xf]
    %v408 = vld [vmem:[%s400 + $0x1c] sm:$0xf]
    %v409 = vld [vmem:[%s400 + $0x20] sm:$0xf]
    %v410 = vld [vmem:[%s400 + $0x24] sm:$0xf]
    %v411 = vld [vmem:[%s400 + $0x28] sm:$0xf]
    %v412 = vld [vmem:[%s400 + $0x2c] sm:$0xf]
    %v413 = vld [vmem:[%s400 + $0x30] sm:$0xf]
    %v414 = vld [vmem:[%s400 + $0x34] sm:$0xf]
    %v415 = vld [vmem:[%s400 + $0x38] sm:$0xf]
    %v416 = vld [vmem:[%s400 + $0x3c] sm:$0xf]
    %v417 = vld [vmem:[%s400 + $0x40] sm:$0xf]
    %v418 = vld [vmem:[%s400 + $0x44] sm:$0xf]
    %v419 = vld [vmem:[%s400 + $0x48] sm:$0xf]
    %v420 = vld [vmem:[%s400 + $0x4c] sm:$0xf]
    %v421 = vld [vmem:[%s400 + $0x50] sm:$0xf]
    %v422 = vld [vmem:[%s400 + $0x54] sm:$0xf]
    %v423 = vld [vmem:[%s400 + $0x58] sm:$0xf]
    %v424 = vld [vmem:[%s400 + $0x5c] sm:$0xf]
    %v425 = vld [vmem:[%s400 + $0x60] sm:$0xf]
    %v426 = vld [vmem:[%s400 + $0x64] sm:$0xf]
    %v427 = vld [vmem:[%s400 + $0x68] sm:$0xf]
    %v428 = vld [vmem:[%s400 + $0x6c] sm:$0xf]
    %v429 = vld [vmem:[%s400 + $0x70] sm:$0xf]
    %v430 = vld [vmem:[%s400 + $0x74] sm:$0xf]
    %v431 = vld [vmem:[%s400 + $0x78] sm:$0xf]
    %v432 = vld [vmem:[%s400 + $0x7c] sm:$0xf]
    %v433 = vld [vmem:[%s400 + $0x80] sm:$0xf]
    %v434 = vld [vmem:[%s400 + $0x84] sm:$0xf]
    %v435 = vld [vmem:[%s400 + $0x88] sm:$0xf]
    %v436 = vld [vmem:[%s400 + $0x8c] sm:$0xf]
    %v437 = vld [vmem:[%s400 + $0x90] sm:$0xf]
    %v438 = vld [vmem:[%s400 + $0x94] sm:$0xf]
    %v439 = vld [vmem:[%s400 + $0x98] sm:$0xf]
    %v440 = vld [vmem:[%s400 + $0x9c] sm:$0xf]
    %v441 = vld [vmem:[%s400 + $0xa0] sm:$0xf]
    %v442 = vld [vmem:[%s400 + $0xa4] sm:$0xf]
    %v443 = vld [vmem:[%s400 + $0xa8] sm:$0xf]
    %v444 = vld [vmem:[%s400 + $0xac] sm:$0xf]
    %v445 = vld [vmem:[%s400 + $0xb0] sm:$0xf]
    %v446 = vld [vmem:[%s400 + $0xb4] sm:$0xf]
    %v447 = vld [vmem:[%s400 + $0xb8] sm:$0xf]
    %v448 = vld [vmem:[%s400 + $0xbc] sm:$0xf]
    %v451 = vunpack.c.h.b16 %v103
    %v452 = vunpack.c.l.b16 %v104
    %v453 = vunpack.c.h.b16 %v107
    %v454 = vunpack.c.l.b16 %v108
    %v455 = vpack.c.b16 %v453, %v451
    %v456 = vpack.c.b16 %v454, %v452
    %v507 = vunpack.c.l.b16 %v401
    %v508 = vunpack.c.l.b16 %v402
    %v509 = vunpack.c.l.b16 %v403
    %v510 = vunpack.c.l.b16 %v404
    %v511 = vunpack.c.l.b16 %v405
    %v512 = vunpack.c.l.b16 %v406
    %v513 = vunpack.c.l.b16 %v407
    %v514 = vunpack.c.l.b16 %v408
    %v515 = vunpack.c.l.b16 %v409
    %v516 = vunpack.c.l.b16 %v410
    %v517 = vunpack.c.l.b16 %v411
    %v518 = vunpack.c.l.b16 %v412
    %v519 = vunpack.c.l.b16 %v413
    %v520 = vunpack.c.l.b16 %v414
    %v521 = vunpack.c.l.b16 %v415
    %v522 = vunpack.c.l.b16 %v416
    %v523 = vunpack.c.l.b16 %v417
    %v524 = vunpack.c.l.b16 %v418
    %v525 = vunpack.c.l.b16 %v419
    %v526 = vunpack.c.l.b16 %v420
    %v527 = vunpack.c.l.b16 %v421
    %v528 = vunpack.c.l.b16 %v422
    %v529 = vunpack.c.l.b16 %v423
    %v530 = vunpack.c.l.b16 %v424
    %v531 = vunpack.c.l.b16 %v425
    %v532 = vunpack.c.l.b16 %v426
    %v533 = vunpack.c.l.b16 %v427
    %v534 = vunpack.c.l.b16 %v428
    %v535 = vunpack.c.l.b16 %v429
    %v536 = vunpack.c.l.b16 %v430
    %v537 = vunpack.c.l.b16 %v431
    %v538 = vunpack.c.l.b16 %v432
    %v539 = vunpack.c.l.b16 %v433
    %v540 = vunpack.c.l.b16 %v434
    %v541 = vunpack.c.l.b16 %v435
    %v542 = vunpack.c.l.b16 %v436
    %v543 = vunpack.c.l.b16 %v437
    %v544 = vunpack.c.l.b16 %v438
    %v545 = vunpack.c.l.b16 %v439
    %v546 = vunpack.c.l.b16 %v440
    %v547 = vunpack.c.l.b16 %v441
    %v548 = vunpack.c.l.b16 %v442
    %v549 = vunpack.c.l.b16 %v443
    %v550 = vunpack.c.l.b16 %v444
    %v551 = vunpack.c.l.b16 %v445
    %v552 = vunpack.c.l.b16 %v446
    %v553 = vunpack.c.l.b16 %v447
    %v554 = vunpack.c.l.b16 %v448
    %v555 = vpack.c.b16 %v508, %v507
    %v556 = vpack.c.b16 %v510, %v509
    %v557 = vpack.c.b16 %v512, %v511
    %v558 = vpack.c.b16 %v514, %v513
    %v559 = vpack.c.b16 %v516, %v515
    %v560 = vpack.c.b16 %v518, %v517
    %v561 = vpack.c.b16 %v520, %v519
    %v562 = vpack.c.b16 %v522, %v521
    %v563 = vpack.c.b16 %v524, %v523
    %v564 = vpack.c.b16 %v526, %v525
    %v565 = vpack.c.b16 %v528, %v527
    %v566 = vpack.c.b16 %v530, %v529
    %v567 = vpack.c.b16 %v532, %v531
    %v568 = vpack.c.b16 %v534, %v533
    %v569 = vpack.c.b16 %v536, %v535
    %v570 = vpack.c.b16 %v538, %v537
    %v571 = vpack.c.b16 %v540, %v539
    %v572 = vpack.c.b16 %v542, %v541
    %v573 = vpack.c.b16 %v544, %v543
    %v574 = vpack.c.b16 %v546, %v545
    %v575 = vpack.c.b16 %v548, %v547
    %v576 = vpack.c.b16 %v550, %v549
    %v577 = vpack.c.b16 %v552, %v551
    %v578 = vpack.c.b16 %v554, %v553
    %603 = vmatprep.subr.bf16.mxu0 0
    %604 = vmatpush1.bf16.msra.mxu0 %v555
    %605 = vmatprep.subr.bf16.mxu0 0
    %606 = vmatpush1.bf16.msra.mxu0 %v556
    %607 = vmatprep.subr.bf16.mxu0 0
    %608 = vmatpush1.bf16.msra.mxu0 %v557
    %609 = vmatprep.subr.bf16.mxu0 0
    %610 = vmatpush1.bf16.msra.mxu0 %v558
    %611 = vmatprep.subr.bf16.mxu0 0
    %612 = vmatpush1.bf16.msra.mxu0 %v559
    %613 = vmatprep.subr.bf16.mxu0 0
    %614 = vmatpush1.bf16.msra.mxu0 %v560
    %615 = vmatprep.subr.bf16.mxu0 0
    %616 = vmatpush1.bf16.msra.mxu0 %v561
    %617 = vmatprep.subr.bf16.mxu0 0
    %618 = vmatpush1.bf16.msra.mxu0 %v562
    %619 = vmatprep.subr.bf16.mxu0 0
    %620 = vmatpush1.bf16.msra.mxu0 %v563
    %621 = vmatprep.subr.bf16.mxu0 0
    %622 = vmatpush1.bf16.msra.mxu0 %v564
    %623 = vmatprep.subr.bf16.mxu0 0
    %624 = vmatpush1.bf16.msra.mxu0 %v565
    %625 = vmatprep.subr.bf16.mxu0 0
    %626 = vmatpush1.bf16.msra.mxu0 %v566
    %627 = vmatprep.subr.bf16.mxu0 0
    %628 = vmatpush1.bf16.msra.mxu0 %v567
    %629 = vmatprep.subr.bf16.mxu0 0
    %630 = vmatpush1.bf16.msra.mxu0 %v568
    %631 = vmatprep.subr.bf16.mxu0 0
    %632 = vmatpush1.bf16.msra.mxu0 %v569
    %633 = vmatprep.subr.bf16.mxu0 0
    %634 = vmatpush1.bf16.msra.mxu0 %v570
    %635 = vmatprep.mubr.bf16.mxu0 %v455
    %636 = vmatmul.mubr.bf16.gmra.mrb[0].mxu0 %v170
    %v637 = vpop.f32.mrb[0].mxu0
    %v638 = vadd.f32 0.0, %v637
    %v639 = vpop.f32.mrb[0].mxu0
    %v640 = vpop.f32.mrb[0].mxu0
    %v641 = vadd.f32 0.0, %v640
    %v642 = vpop.f32.mrb[0].mxu0
    %643 = vdwg.mxu0
    %644 = vmatprep.subr.bf16.mxu0 0
    %645 = vmatpush1.bf16.msra.mxu0 %v571
    %646 = vmatprep.subr.bf16.mxu0 0
    %647 = vmatpush1.bf16.msra.mxu0 %v572
    %648 = vmatprep.subr.bf16.mxu0 0
    %649 = vmatpush1.bf16.msra.mxu0 %v573
    %650 = vmatprep.subr.bf16.mxu0 0
    %651 = vmatpush1.bf16.msra.mxu0 %v574
    %652 = vmatprep.subr.bf16.mxu0 0
    %653 = vmatpush1.bf16.msra.mxu0 %v575
    %654 = vmatprep.subr.bf16.mxu0 0
    %655 = vmatpush1.bf16.msra.mxu0 %v576
    %656 = vmatprep.subr.bf16.mxu0 0
    %657 = vmatpush1.bf16.msra.mxu0 %v577
    %658 = vmatprep.subr.bf16.mxu0 0
    %659 = vmatpush1.bf16.msra.mxu0 %v578
    %660 = vmatprep.subr.bf16.mxu0 0
    %661 = vmatpush1.bf16.msra.mxu0 0
    %662 = vmatprep.subr.bf16.mxu0 0
    %663 = vmatpush1.bf16.msra.mxu0 0
    %664 = vmatprep.subr.bf16.mxu0 0
    %665 = vmatpush1.bf16.msra.mxu0 0
    %666 = vmatprep.subr.bf16.mxu0 0
    %667 = vmatpush1.bf16.msra.mxu0 0
    %668 = vmatprep.subr.bf16.mxu0 0
    %669 = vmatpush1.bf16.msra.mxu0 0
    %670 = vmatprep.subr.bf16.mxu0 0
    %671 = vmatpush1.bf16.msra.mxu0 0
    %672 = vmatprep.subr.bf16.mxu0 0
    %673 = vmatpush1.bf16.msra.mxu0 0
    %674 = vmatprep.subr.bf16.mxu0 0
    %675 = vmatpush1.bf16.msra.mxu0 0
    %676 = vmatprep.mubr.bf16.mxu0 0
    %677 = vmatmul.mubr.bf16.gmra.mrb[0].mxu0 %v456
    %v678 = vpop.f32.mrb[0].mxu0
    %v679 = vadd.f32 %v638, %v678
    %v680 = vpop.f32.mrb[0].mxu0
    %v681 = vpop.f32.mrb[0].mxu0
    %v682 = vadd.f32 %v641, %v681
    %v683 = vpop.f32.mrb[0].mxu0
    %684 = vdwg.mxu0
    %s685 = scalar_lea.vmem [#allocation5], 384
    %v686 = vld [vmem:[%s685] sm:$0xf]
    %v687 = vld [vmem:[%s685 + $0x4] sm:$0xf]
    %v688 = vld [vmem:[%s685 + $0x8] sm:$0xf]
    %v689 = vld [vmem:[%s685 + $0xc] sm:$0xf]
    %v690 = vld [vmem:[%s685 + $0x10] sm:$0xf]
    %v691 = vld [vmem:[%s685 + $0x14] sm:$0xf]
    %v692 = vld [vmem:[%s685 + $0x18] sm:$0xf]
    %v693 = vld [vmem:[%s685 + $0x1c] sm:$0xf]
    %v694 = vld [vmem:[%s685 + $0x20] sm:$0xf]
    %v695 = vld [vmem:[%s685 + $0x24] sm:$0xf]
    %v696 = vld [vmem:[%s685 + $0x28] sm:$0xf]
    %v697 = vld [vmem:[%s685 + $0x2c] sm:$0xf]
    %v698 = vld [vmem:[%s685 + $0x30] sm:$0xf]
    %v699 = vld [vmem:[%s685 + $0x34] sm:$0xf]
    %v700 = vld [vmem:[%s685 + $0x38] sm:$0xf]
    %v701 = vld [vmem:[%s685 + $0x3c] sm:$0xf]
    %v702 = vld [vmem:[%s685 + $0x40] sm:$0xf]
    %v703 = vld [vmem:[%s685 + $0x44] sm:$0xf]
    %v704 = vld [vmem:[%s685 + $0x48] sm:$0xf]
    %v705 = vld [vmem:[%s685 + $0x4c] sm:$0xf]
    %v706 = vld [vmem:[%s685 + $0x50] sm:$0xf]
    %v707 = vld [vmem:[%s685 + $0x54] sm:$0xf]
    %v708 = vld [vmem:[%s685 + $0x58] sm:$0xf]
    %v709 = vld [vmem:[%s685 + $0x5c] sm:$0xf]
    %v710 = vld [vmem:[%s685 + $0x60] sm:$0xf]
    %v711 = vld [vmem:[%s685 + $0x64] sm:$0xf]
    %v712 = vld [vmem:[%s685 + $0x68] sm:$0xf]
    %v713 = vld [vmem:[%s685 + $0x6c] sm:$0xf]
    %v714 = vld [vmem:[%s685 + $0x70] sm:$0xf]
    %v715 = vld [vmem:[%s685 + $0x74] sm:$0xf]
    %v716 = vld [vmem:[%s685 + $0x78] sm:$0xf]
    %v717 = vld [vmem:[%s685 + $0x7c] sm:$0xf]
    %v718 = vld [vmem:[%s685 + $0x80] sm:$0xf]
    %v719 = vld [vmem:[%s685 + $0x84] sm:$0xf]
    %v720 = vld [vmem:[%s685 + $0x88] sm:$0xf]
    %v721 = vld [vmem:[%s685 + $0x8c] sm:$0xf]
    %v722 = vld [vmem:[%s685 + $0x90] sm:$0xf]
    %v723 = vld [vmem:[%s685 + $0x94] sm:$0xf]
    %v724 = vld [vmem:[%s685 + $0x98] sm:$0xf]
    %v725 = vld [vmem:[%s685 + $0x9c] sm:$0xf]
    %v726 = vld [vmem:[%s685 + $0xa0] sm:$0xf]
    %v727 = vld [vmem:[%s685 + $0xa4] sm:$0xf]
    %v728 = vld [vmem:[%s685 + $0xa8] sm:$0xf]
    %v729 = vld [vmem:[%s685 + $0xac] sm:$0xf]
    %v730 = vld [vmem:[%s685 + $0xb0] sm:$0xf]
    %v731 = vld [vmem:[%s685 + $0xb4] sm:$0xf]
    %v732 = vld [vmem:[%s685 + $0xb8] sm:$0xf]
    %v733 = vld [vmem:[%s685 + $0xbc] sm:$0xf]
    %v736 = vunpack.c.h.b16 %v104
    %v737 = vunpack.c.l.b16 %v105
    %v738 = vunpack.c.h.b16 %v108
    %v739 = vunpack.c.l.b16 %v109
    %v740 = vpack.c.b16 %v738, %v736
    %v741 = vpack.c.b16 %v739, %v737
    %v792 = vunpack.c.l.b16 %v686
    %v793 = vunpack.c.l.b16 %v687
    %v794 = vunpack.c.l.b16 %v688
    %v795 = vunpack.c.l.b16 %v689
    %v796 = vunpack.c.l.b16 %v690
    %v797 = vunpack.c.l.b16 %v691
    %v798 = vunpack.c.l.b16 %v692
    %v799 = vunpack.c.l.b16 %v693
    %v800 = vunpack.c.l.b16 %v694
    %v801 = vunpack.c.l.b16 %v695
    %v802 = vunpack.c.l.b16 %v696
    %v803 = vunpack.c.l.b16 %v697
    %v804 = vunpack.c.l.b16 %v698
    %v805 = vunpack.c.l.b16 %v699
    %v806 = vunpack.c.l.b16 %v700
    %v807 = vunpack.c.l.b16 %v701
    %v808 = vunpack.c.l.b16 %v702
    %v809 = vunpack.c.l.b16 %v703
    %v810 = vunpack.c.l.b16 %v704
    %v811 = vunpack.c.l.b16 %v705
    %v812 = vunpack.c.l.b16 %v706
    %v813 = vunpack.c.l.b16 %v707
    %v814 = vunpack.c.l.b16 %v708
    %v815 = vunpack.c.l.b16 %v709
    %v816 = vunpack.c.l.b16 %v710
    %v817 = vunpack.c.l.b16 %v711
    %v818 = vunpack.c.l.b16 %v712
    %v819 = vunpack.c.l.b16 %v713
    %v820 = vunpack.c.l.b16 %v714
    %v821 = vunpack.c.l.b16 %v715
    %v822 = vunpack.c.l.b16 %v716
    %v823 = vunpack.c.l.b16 %v717
    %v824 = vunpack.c.l.b16 %v718
    %v825 = vunpack.c.l.b16 %v719
    %v826 = vunpack.c.l.b16 %v720
    %v827 = vunpack.c.l.b16 %v721
    %v828 = vunpack.c.l.b16 %v722
    %v829 = vunpack.c.l.b16 %v723
    %v830 = vunpack.c.l.b16 %v724
    %v831 = vunpack.c.l.b16 %v725
    %v832 = vunpack.c.l.b16 %v726
    %v833 = vunpack.c.l.b16 %v727
    %v834 = vunpack.c.l.b16 %v728
    %v835 = vunpack.c.l.b16 %v729
    %v836 = vunpack.c.l.b16 %v730
    %v837 = vunpack.c.l.b16 %v731
    %v838 = vunpack.c.l.b16 %v732
    %v839 = vunpack.c.l.b16 %v733
    %v840 = vpack.c.b16 %v793, %v792
    %v841 = vpack.c.b16 %v795, %v794
    %v842 = vpack.c.b16 %v797, %v796
    %v843 = vpack.c.b16 %v799, %v798
    %v844 = vpack.c.b16 %v801, %v800
    %v845 = vpack.c.b16 %v803, %v802
    %v846 = vpack.c.b16 %v805, %v804
    %v847 = vpack.c.b16 %v807, %v806
    %v848 = vpack.c.b16 %v809, %v808
    %v849 = vpack.c.b16 %v811, %v810
    %v850 = vpack.c.b16 %v813, %v812
    %v851 = vpack.c.b16 %v815, %v814
    %v852 = vpack.c.b16 %v817, %v816
    %v853 = vpack.c.b16 %v819, %v818
    %v854 = vpack.c.b16 %v821, %v820
    %v855 = vpack.c.b16 %v823, %v822
    %v856 = vpack.c.b16 %v825, %v824
    %v857 = vpack.c.b16 %v827, %v826
    %v858 = vpack.c.b16 %v829, %v828
    %v859 = vpack.c.b16 %v831, %v830
    %v860 = vpack.c.b16 %v833, %v832
    %v861 = vpack.c.b16 %v835, %v834
    %v862 = vpack.c.b16 %v837, %v836
    %v863 = vpack.c.b16 %v839, %v838
    %888 = vmatprep.subr.bf16.mxu0 0
    %889 = vmatpush1.bf16.msra.mxu0 %v840
    %890 = vmatprep.subr.bf16.mxu0 0
    %891 = vmatpush1.bf16.msra.mxu0 %v841
    %892 = vmatprep.subr.bf16.mxu0 0
    %893 = vmatpush1.bf16.msra.mxu0 %v842
    %894 = vmatprep.subr.bf16.mxu0 0
    %895 = vmatpush1.bf16.msra.mxu0 %v843
    %896 = vmatprep.subr.bf16.mxu0 0
    %897 = vmatpush1.bf16.msra.mxu0 %v844
    %898 = vmatprep.subr.bf16.mxu0 0
    %899 = vmatpush1.bf16.msra.mxu0 %v845
    %900 = vmatprep.subr.bf16.mxu0 0
    %901 = vmatpush1.bf16.msra.mxu0 %v846
    %902 = vmatprep.subr.bf16.mxu0 0
    %903 = vmatpush1.bf16.msra.mxu0 %v847
    %904 = vmatprep.subr.bf16.mxu0 0
    %905 = vmatpush1.bf16.msra.mxu0 %v848
    %906 = vmatprep.subr.bf16.mxu0 0
    %907 = vmatpush1.bf16.msra.mxu0 %v849
    %908 = vmatprep.subr.bf16.mxu0 0
    %909 = vmatpush1.bf16.msra.mxu0 %v850
    %910 = vmatprep.subr.bf16.mxu0 0
    %911 = vmatpush1.bf16.msra.mxu0 %v851
    %912 = vmatprep.subr.bf16.mxu0 0
    %913 = vmatpush1.bf16.msra.mxu0 %v852
    %914 = vmatprep.subr.bf16.mxu0 0
    %915 = vmatpush1.bf16.msra.mxu0 %v853
    %916 = vmatprep.subr.bf16.mxu0 0
    %917 = vmatpush1.bf16.msra.mxu0 %v854
    %918 = vmatprep.subr.bf16.mxu0 0
    %919 = vmatpush1.bf16.msra.mxu0 %v855
    %920 = vmatprep.mubr.bf16.mxu0 %v740
    %921 = vmatmul.mubr.bf16.gmra.mrb[0].mxu0 %v456
    %v922 = vpop.f32.mrb[0].mxu0
    %v923 = vadd.f32 0.0, %v922
    %v924 = vpop.f32.mrb[0].mxu0
    %v925 = vpop.f32.mrb[0].mxu0
    %v926 = vadd.f32 0.0, %v925
    %v927 = vpop.f32.mrb[0].mxu0
    %928 = vdwg.mxu0
    %929 = vmatprep.subr.bf16.mxu0 0
    %930 = vmatpush1.bf16.msra.mxu0 %v856
    %931 = vmatprep.subr.bf16.mxu0 0
    %932 = vmatpush1.bf16.msra.mxu0 %v857
    %933 = vmatprep.subr.bf16.mxu0 0
    %934 = vmatpush1.bf16.msra.mxu0 %v858
    %935 = vmatprep.subr.bf16.mxu0 0
    %936 = vmatpush1.bf16.msra.mxu0 %v859
    %937 = vmatprep.subr.bf16.mxu0 0
    %938 = vmatpush1.bf16.msra.mxu0 %v860
    %939 = vmatprep.subr.bf16.mxu0 0
    %940 = vmatpush1.bf16.msra.mxu0 %v861
    %941 = vmatprep.subr.bf16.mxu0 0
    %942 = vmatpush1.bf16.msra.mxu0 %v862
    %943 = vmatprep.subr.bf16.mxu0 0
    %944 = vmatpush1.bf16.msra.mxu0 %v863
    %945 = vmatprep.subr.bf16.mxu0 0
    %946 = vmatpush1.bf16.msra.mxu0 0
    %947 = vmatprep.subr.bf16.mxu0 0
    %948 = vmatpush1.bf16.msra.mxu0 0
    %949 = vmatprep.subr.bf16.mxu0 0
    %950 = vmatpush1.bf16.msra.mxu0 0
    %951 = vmatprep.subr.bf16.mxu0 0
    %952 = vmatpush1.bf16.msra.mxu0 0
    %953 = vmatprep.subr.bf16.mxu0 0
    %954 = vmatpush1.bf16.msra.mxu0 0
    %955 = vmatprep.subr.bf16.mxu0 0
    %956 = vmatpush1.bf16.msra.mxu0 0
    %957 = vmatprep.subr.bf16.mxu0 0
    %958 = vmatpush1.bf16.msra.mxu0 0
    %959 = vmatprep.subr.bf16.mxu0 0
    %960 = vmatpush1.bf16.msra.mxu0 0
    %961 = vmatprep.mubr.bf16.mxu0 0
    %962 = vmatmul.mubr.bf16.gmra.mrb[0].mxu0 %v741
    %v963 = vpop.f32.mrb[0].mxu0
    %v964 = vadd.f32 %v923, %v963
    %v965 = vpop.f32.mrb[0].mxu0
    %v966 = vpop.f32.mrb[0].mxu0
    %v967 = vadd.f32 %v926, %v966
    %v968 = vpop.f32.mrb[0].mxu0
    %969 = vdwg.mxu0
    %s970 = scalar_lea.vmem [#allocation5], 576
    %v971 = vld [vmem:[%s970] sm:$0xf]
    %v972 = vld [vmem:[%s970 + $0x4] sm:$0xf]
    %v973 = vld [vmem:[%s970 + $0x8] sm:$0xf]
    %v974 = vld [vmem:[%s970 + $0xc] sm:$0xf]
    %v975 = vld [vmem:[%s970 + $0x10] sm:$0xf]
    %v976 = vld [vmem:[%s970 + $0x14] sm:$0xf]
    %v977 = vld [vmem:[%s970 + $0x18] sm:$0xf]
    %v978 = vld [vmem:[%s970 + $0x1c] sm:$0xf]
    %v979 = vld [vmem:[%s970 + $0x20] sm:$0xf]
    %v980 = vld [vmem:[%s970 + $0x24] sm:$0xf]
    %v981 = vld [vmem:[%s970 + $0x28] sm:$0xf]
    %v982 = vld [vmem:[%s970 + $0x2c] sm:$0xf]
    %v983 = vld [vmem:[%s970 + $0x30] sm:$0xf]
    %v984 = vld [vmem:[%s970 + $0x34] sm:$0xf]
    %v985 = vld [vmem:[%s970 + $0x38] sm:$0xf]
    %v986 = vld [vmem:[%s970 + $0x3c] sm:$0xf]
    %v987 = vld [vmem:[%s970 + $0x40] sm:$0xf]
    %v988 = vld [vmem:[%s970 + $0x44] sm:$0xf]
    %v989 = vld [vmem:[%s970 + $0x48] sm:$0xf]
    %v990 = vld [vmem:[%s970 + $0x4c] sm:$0xf]
    %v991 = vld [vmem:[%s970 + $0x50] sm:$0xf]
    %v992 = vld [vmem:[%s970 + $0x54] sm:$0xf]
    %v993 = vld [vmem:[%s970 + $0x58] sm:$0xf]
    %v994 = vld [vmem:[%s970 + $0x5c] sm:$0xf]
    %v995 = vld [vmem:[%s970 + $0x60] sm:$0xf]
    %v996 = vld [vmem:[%s970 + $0x64] sm:$0xf]
    %v997 = vld [vmem:[%s970 + $0x68] sm:$0xf]
    %v998 = vld [vmem:[%s970 + $0x6c] sm:$0xf]
    %v999 = vld [vmem:[%s970 + $0x70] sm:$0xf]
    %v1000 = vld [vmem:[%s970 + $0x74] sm:$0xf]
    %v1001 = vld [vmem:[%s970 + $0x78] sm:$0xf]
    %v1002 = vld [vmem:[%s970 + $0x7c] sm:$0xf]
    %v1003 = vld [vmem:[%s970 + $0x80] sm:$0xf]
    %v1004 = vld [vmem:[%s970 + $0x84] sm:$0xf]
    %v1005 = vld [vmem:[%s970 + $0x88] sm:$0xf]
    %v1006 = vld [vmem:[%s970 + $0x8c] sm:$0xf]
    %v1007 = vld [vmem:[%s970 + $0x90] sm:$0xf]
    %v1008 = vld [vmem:[%s970 + $0x94] sm:$0xf]
    %v1009 = vld [vmem:[%s970 + $0x98] sm:$0xf]
    %v1010 = vld [vmem:[%s970 + $0x9c] sm:$0xf]
    %v1011 = vld [vmem:[%s970 + $0xa0] sm:$0xf]
    %v1012 = vld [vmem:[%s970 + $0xa4] sm:$0xf]
    %v1013 = vld [vmem:[%s970 + $0xa8] sm:$0xf]
    %v1014 = vld [vmem:[%s970 + $0xac] sm:$0xf]
    %v1015 = vld [vmem:[%s970 + $0xb0] sm:$0xf]
    %v1016 = vld [vmem:[%s970 + $0xb4] sm:$0xf]
    %v1017 = vld [vmem:[%s970 + $0xb8] sm:$0xf]
    %v1018 = vld [vmem:[%s970 + $0xbc] sm:$0xf]
    %v1019 = vunpack.c.h.b16 %v105
    %v1020 = vunpack.c.h.b16 %v109
    %v1021 = vpack.c.b16 %v1020, %v1019
    %v1071 = vunpack.c.l.b16 %v971
    %v1072 = vunpack.c.l.b16 %v972
    %v1073 = vunpack.c.l.b16 %v973
    %v1074 = vunpack.c.l.b16 %v974
    %v1075 = vunpack.c.l.b16 %v975
    %v1076 = vunpack.c.l.b16 %v976
    %v1077 = vunpack.c.l.b16 %v977
    %v1078 = vunpack.c.l.b16 %v978
    %v1079 = vunpack.c.l.b16 %v979
    %v1080 = vunpack.c.l.b16 %v980
    %v1081 = vunpack.c.l.b16 %v981
    %v1082 = vunpack.c.l.b16 %v982
    %v1083 = vunpack.c.l.b16 %v983
    %v1084 = vunpack.c.l.b16 %v984
    %v1085 = vunpack.c.l.b16 %v985
    %v1086 = vunpack.c.l.b16 %v986
    %v1087 = vunpack.c.l.b16 %v987
    %v1088 = vunpack.c.l.b16 %v988
    %v1089 = vunpack.c.l.b16 %v989
    %v1090 = vunpack.c.l.b16 %v990
    %v1091 = vunpack.c.l.b16 %v991
    %v1092 = vunpack.c.l.b16 %v992
    %v1093 = vunpack.c.l.b16 %v993
    %v1094 = vunpack.c.l.b16 %v994
    %v1095 = vunpack.c.l.b16 %v995
    %v1096 = vunpack.c.l.b16 %v996
    %v1097 = vunpack.c.l.b16 %v997
    %v1098 = vunpack.c.l.b16 %v998
    %v1099 = vunpack.c.l.b16 %v999
    %v1100 = vunpack.c.l.b16 %v1000
    %v1101 = vunpack.c.l.b16 %v1001
    %v1102 = vunpack.c.l.b16 %v1002
    %v1103 = vunpack.c.l.b16 %v1003
    %v1104 = vunpack.c.l.b16 %v1004
    %v1105 = vunpack.c.l.b16 %v1005
    %v1106 = vunpack.c.l.b16 %v1006
    %v1107 = vunpack.c.l.b16 %v1007
    %v1108 = vunpack.c.l.b16 %v1008
    %v1109 = vunpack.c.l.b16 %v1009
    %v1110 = vunpack.c.l.b16 %v1010
    %v1111 = vunpack.c.l.b16 %v1011
    %v1112 = vunpack.c.l.b16 %v1012
    %v1113 = vunpack.c.l.b16 %v1013
    %v1114 = vunpack.c.l.b16 %v1014
    %v1115 = vunpack.c.l.b16 %v1015
    %v1116 = vunpack.c.l.b16 %v1016
    %v1117 = vunpack.c.l.b16 %v1017
    %v1118 = vunpack.c.l.b16 %v1018
    %v1119 = vpack.c.b16 %v1072, %v1071
    %v1120 = vpack.c.b16 %v1074, %v1073
    %v1121 = vpack.c.b16 %v1076, %v1075
    %v1122 = vpack.c.b16 %v1078, %v1077
    %v1123 = vpack.c.b16 %v1080, %v1079
    %v1124 = vpack.c.b16 %v1082, %v1081
    %v1125 = vpack.c.b16 %v1084, %v1083
    %v1126 = vpack.c.b16 %v1086, %v1085
    %v1127 = vpack.c.b16 %v1088, %v1087
    %v1128 = vpack.c.b16 %v1090, %v1089
    %v1129 = vpack.c.b16 %v1092, %v1091
    %v1130 = vpack.c.b16 %v1094, %v1093
    %v1131 = vpack.c.b16 %v1096, %v1095
    %v1132 = vpack.c.b16 %v1098, %v1097
    %v1133 = vpack.c.b16 %v1100, %v1099
    %v1134 = vpack.c.b16 %v1102, %v1101
    %v1135 = vpack.c.b16 %v1104, %v1103
    %v1136 = vpack.c.b16 %v1106, %v1105
    %v1137 = vpack.c.b16 %v1108, %v1107
    %v1138 = vpack.c.b16 %v1110, %v1109
    %v1139 = vpack.c.b16 %v1112, %v1111
    %v1140 = vpack.c.b16 %v1114, %v1113
    %v1141 = vpack.c.b16 %v1116, %v1115
    %v1142 = vpack.c.b16 %v1118, %v1117
    %1167 = vmatprep.subr.bf16.mxu0 0
    %1168 = vmatpush1.bf16.msra.mxu0 %v1119
    %1169 = vmatprep.subr.bf16.mxu0 0
    %1170 = vmatpush1.bf16.msra.mxu0 %v1120
    %1171 = vmatprep.subr.bf16.mxu0 0
    %1172 = vmatpush1.bf16.msra.mxu0 %v1121
    %1173 = vmatprep.subr.bf16.mxu0 0
    %1174 = vmatpush1.bf16.msra.mxu0 %v1122
    %1175 = vmatprep.subr.bf16.mxu0 0
    %1176 = vmatpush1.bf16.msra.mxu0 %v1123
    %1177 = vmatprep.subr.bf16.mxu0 0
    %1178 = vmatpush1.bf16.msra.mxu0 %v1124
    %1179 = vmatprep.subr.bf16.mxu0 0
    %1180 = vmatpush1.bf16.msra.mxu0 %v1125
    %1181 = vmatprep.subr.bf16.mxu0 0
    %1182 = vmatpush1.bf16.msra.mxu0 %v1126
    %1183 = vmatprep.subr.bf16.mxu0 0
    %1184 = vmatpush1.bf16.msra.mxu0 %v1127
    %1185 = vmatprep.subr.bf16.mxu0 0
    %1186 = vmatpush1.bf16.msra.mxu0 %v1128
    %1187 = vmatprep.subr.bf16.mxu0 0
    %1188 = vmatpush1.bf16.msra.mxu0 %v1129
    %1189 = vmatprep.subr.bf16.mxu0 0
    %1190 = vmatpush1.bf16.msra.mxu0 %v1130
    %1191 = vmatprep.subr.bf16.mxu0 0
    %1192 = vmatpush1.bf16.msra.mxu0 %v1131
    %1193 = vmatprep.subr.bf16.mxu0 0
    %1194 = vmatpush1.bf16.msra.mxu0 %v1132
    %1195 = vmatprep.subr.bf16.mxu0 0
    %1196 = vmatpush1.bf16.msra.mxu0 %v1133
    %1197 = vmatprep.subr.bf16.mxu0 0
    %1198 = vmatpush1.bf16.msra.mxu0 %v1134
    %1199 = vmatprep.mubr.bf16.mxu0 %v741
    %1200 = vmatmul.mubr.bf16.gmra.mrb[0].mxu0 %v740
    %v1201 = vpop.f32.mrb[0].mxu0
    %v1202 = vadd.f32 0.0, %v1201
    %v1203 = vpop.f32.mrb[0].mxu0
    %v1204 = vpop.f32.mrb[0].mxu0
    %v1205 = vadd.f32 0.0, %v1204
    %v1206 = vpop.f32.mrb[0].mxu0
    %1207 = vdwg.mxu0
    %1208 = vmatprep.subr.bf16.mxu0 0
    %1209 = vmatpush1.bf16.msra.mxu0 %v1135
    %1210 = vmatprep.subr.bf16.mxu0 0
    %1211 = vmatpush1.bf16.msra.mxu0 %v1136
    %1212 = vmatprep.subr.bf16.mxu0 0
    %1213 = vmatpush1.bf16.msra.mxu0 %v1137
    %1214 = vmatprep.subr.bf16.mxu0 0
    %1215 = vmatpush1.bf16.msra.mxu0 %v1138
    %1216 = vmatprep.subr.bf16.mxu0 0
    %1217 = vmatpush1.bf16.msra.mxu0 %v1139
    %1218 = vmatprep.subr.bf16.mxu0 0
    %1219 = vmatpush1.bf16.msra.mxu0 %v1140
    %1220 = vmatprep.subr.bf16.mxu0 0
    %1221 = vmatpush1.bf16.msra.mxu0 %v1141
    %1222 = vmatprep.subr.bf16.mxu0 0
    %1223 = vmatpush1.bf16.msra.mxu0 %v1142
    %1224 = vmatprep.subr.bf16.mxu0 0
    %1225 = vmatpush1.bf16.msra.mxu0 0
    %1226 = vmatprep.subr.bf16.mxu0 0
    %1227 = vmatpush1.bf16.msra.mxu0 0
    %1228 = vmatprep.subr.bf16.mxu0 0
    %1229 = vmatpush1.bf16.msra.mxu0 0
    %1230 = vmatprep.subr.bf16.mxu0 0
    %1231 = vmatpush1.bf16.msra.mxu0 0
    %1232 = vmatprep.subr.bf16.mxu0 0
    %1233 = vmatpush1.bf16.msra.mxu0 0
    %1234 = vmatprep.subr.bf16.mxu0 0
    %1235 = vmatpush1.bf16.msra.mxu0 0
    %1236 = vmatprep.subr.bf16.mxu0 0
    %1237 = vmatpush1.bf16.msra.mxu0 0
    %1238 = vmatprep.subr.bf16.mxu0 0
    %1239 = vmatpush1.bf16.msra.mxu0 0
    %1240 = vmatprep.mubr.bf16.mxu0 0
    %1241 = vmatmul.mubr.bf16.gmra.mrb[0].mxu0 %v1021
    %v1242 = vpop.f32.mrb[0].mxu0
    %v1243 = vadd.f32 %v1202, %v1242
    %v1244 = vpop.f32.mrb[0].mxu0
    %v1245 = vpop.f32.mrb[0].mxu0
    %v1246 = vadd.f32 %v1205, %v1245
    %v1247 = vpop.f32.mrb[0].mxu0
    %1248 = vdwg.mxu0
    %v1249 = vld [vmem:[%s2] sm:$0xf]
    %v1251 = vlaneseq
    %v1252 = vshrl.u32 %v1251, 7
    %v1253 = vsub.s32 0, %v1252
    %v1254 = vrot.slane %v1249, %v1253
    %v1255 = vlaneseq
    %v1256 = vshrl.u32 %v1255, 7
    %v1257 = vsub.s32 1, %v1256
    %v1258 = vrot.slane %v1249, %v1257
    %v1259 = vlaneseq
    %v1260 = vshrl.u32 %v1259, 7
    %v1261 = vsub.s32 2, %v1260
    %v1262 = vrot.slane %v1249, %v1261
    %v1263 = vlaneseq
    %v1264 = vshrl.u32 %v1263, 7
    %v1265 = vsub.s32 3, %v1264
    %v1266 = vrot.slane %v1249, %v1265
    %v1271 = vadd.f32 %v394, %v1254
    %v1272 = vadd.f32 %v679, %v1258
    %v1273 = vadd.f32 %v964, %v1262
    %v1274 = vadd.f32 %v1243, %v1266
    %v1275 = vadd.f32 %v397, %v1254
    %v1276 = vadd.f32 %v682, %v1258
    %v1277 = vadd.f32 %v967, %v1262
    %v1278 = vadd.f32 %v1246, %v1266
    %vm1279 = vcmp.ge.f32.partialorder %v1271, 0.0
    %vm1280 = vcmp.ge.f32.partialorder %v1272, 0.0
    %vm1281 = vcmp.ge.f32.partialorder %v1273, 0.0
    %vm1282 = vcmp.ge.f32.partialorder %v1274, 0.0
    %vm1283 = vcmp.ge.f32.partialorder %v1275, 0.0
    %vm1284 = vcmp.ge.f32.partialorder %v1276, 0.0
    %vm1285 = vcmp.ge.f32.partialorder %v1277, 0.0
    %vm1286 = vcmp.ge.f32.partialorder %v1278, 0.0
    %v1287 = vmul.f32 %v1271, 0.2
    %v1288 = vmul.f32 %v1272, 0.2
    %v1289 = vmul.f32 %v1273, 0.2
    %v1290 = vmul.f32 %v1274, 0.2
    %v1291 = vmul.f32 %v1275, 0.2
    %v1292 = vmul.f32 %v1276, 0.2
    %v1293 = vmul.f32 %v1277, 0.2
    %v1294 = vmul.f32 %v1278, 0.2
    %v1295 = vsel %vm1279, %v1271, %v1287
    %v1296 = vsel %vm1280, %v1272, %v1288
    %v1297 = vsel %vm1281, %v1273, %v1289
    %v1298 = vsel %vm1282, %v1274, %v1290
    %v1299 = vsel %vm1283, %v1275, %v1291
    %v1300 = vsel %vm1284, %v1276, %v1292
    %v1301 = vsel %vm1285, %v1277, %v1293
    %v1302 = vsel %vm1286, %v1278, %v1294
    %v1303 = vpack.c.bf16 %v1299, %v1295
    %v1304 = vpack.c.bf16 %v1300, %v1296
    %v1305 = vpack.c.bf16 %v1301, %v1297
    %v1306 = vpack.c.bf16 %v1302, %v1298
    %v1307 = vld [vmem:[#allocation7] sm:$0xf]
    %v1308 = vld [vmem:[#allocation7 + $0x4] sm:$0xf]
    %v1309 = vld [vmem:[#allocation7 + $0x8] sm:$0xf]
    %v1310 = vld [vmem:[#allocation7 + $0xc] sm:$0xf]
    %v1311 = vld [vmem:[#allocation7 + $0x10] sm:$0xf]
    %v1312 = vld [vmem:[#allocation7 + $0x14] sm:$0xf]
    %v1313 = vld [vmem:[#allocation7 + $0x18] sm:$0xf]
    %v1314 = vld [vmem:[#allocation7 + $0x1c] sm:$0xf]
    %v1315 = vld [vmem:[#allocation7 + $0x20] sm:$0xf]
    %v1316 = vld [vmem:[#allocation7 + $0x24] sm:$0xf]
    %v1317 = vld [vmem:[#allocation7 + $0x28] sm:$0xf]
    %v1318 = vld [vmem:[#allocation7 + $0x2c] sm:$0xf]
    %v1319 = vld [vmem:[#allocation7 + $0x30] sm:$0xf]
    %v1320 = vld [vmem:[#allocation7 + $0x34] sm:$0xf]
    %v1321 = vld [vmem:[#allocation7 + $0x38] sm:$0xf]
    %v1322 = vld [vmem:[#allocation7 + $0x3c] sm:$0xf]
    %v1323 = vld [vmem:[#allocation7 + $0x40] sm:$0xf]
    %v1324 = vld [vmem:[#allocation7 + $0x44] sm:$0xf]
    %v1325 = vld [vmem:[#allocation7 + $0x48] sm:$0xf]
    %v1326 = vld [vmem:[#allocation7 + $0x4c] sm:$0xf]
    %v1327 = vld [vmem:[#allocation7 + $0x50] sm:$0xf]
    %v1328 = vld [vmem:[#allocation7 + $0x54] sm:$0xf]
    %v1329 = vld [vmem:[#allocation7 + $0x58] sm:$0xf]
    %v1330 = vld [vmem:[#allocation7 + $0x5c] sm:$0xf]
    %v1331 = vld [vmem:[#allocation7 + $0x60] sm:$0xf]
    %v1332 = vld [vmem:[#allocation7 + $0x64] sm:$0xf]
    %v1333 = vld [vmem:[#allocation7 + $0x68] sm:$0xf]
    %v1334 = vld [vmem:[#allocation7 + $0x6c] sm:$0xf]
    %v1335 = vld [vmem:[#allocation7 + $0x70] sm:$0xf]
    %v1336 = vld [vmem:[#allocation7 + $0x74] sm:$0xf]
    %v1337 = vld [vmem:[#allocation7 + $0x78] sm:$0xf]
    %v1338 = vld [vmem:[#allocation7 + $0x7c] sm:$0xf]
    %v1339 = vld [vmem:[#allocation7 + $0x80] sm:$0xf]
    %v1340 = vld [vmem:[#allocation7 + $0x84] sm:$0xf]
    %v1341 = vld [vmem:[#allocation7 + $0x88] sm:$0xf]
    %v1342 = vld [vmem:[#allocation7 + $0x8c] sm:$0xf]
    %v1343 = vld [vmem:[#allocation7 + $0x90] sm:$0xf]
    %v1344 = vld [vmem:[#allocation7 + $0x94] sm:$0xf]
    %v1345 = vld [vmem:[#allocation7 + $0x98] sm:$0xf]
    %v1346 = vld [vmem:[#allocation7 + $0x9c] sm:$0xf]
    %v1347 = vld [vmem:[#allocation7 + $0xa0] sm:$0xf]
    %v1348 = vld [vmem:[#allocation7 + $0xa4] sm:$0xf]
    %v1349 = vld [vmem:[#allocation7 + $0xa8] sm:$0xf]
    %v1350 = vld [vmem:[#allocation7 + $0xac] sm:$0xf]
    %v1351 = vld [vmem:[#allocation7 + $0xb0] sm:$0xf]
    %v1352 = vld [vmem:[#allocation7 + $0xb4] sm:$0xf]
    %v1353 = vld [vmem:[#allocation7 + $0xb8] sm:$0xf]
    %v1354 = vld [vmem:[#allocation7 + $0xbc] sm:$0xf]
    %v1355 = vld [vmem:[#allocation7 + $0xc0] sm:$0xf]
    %v1356 = vld [vmem:[#allocation7 + $0xc4] sm:$0xf]
    %v1357 = vld [vmem:[#allocation7 + $0xc8] sm:$0xf]
    %v1358 = vld [vmem:[#allocation7 + $0xcc] sm:$0xf]
    %v1359 = vld [vmem:[#allocation7 + $0xd0] sm:$0xf]
    %v1360 = vld [vmem:[#allocation7 + $0xd4] sm:$0xf]
    %v1361 = vld [vmem:[#allocation7 + $0xd8] sm:$0xf]
    %v1362 = vld [vmem:[#allocation7 + $0xdc] sm:$0xf]
    %v1363 = vld [vmem:[#allocation7 + $0xe0] sm:$0xf]
    %v1364 = vld [vmem:[#allocation7 + $0xe4] sm:$0xf]
    %v1365 = vld [vmem:[#allocation7 + $0xe8] sm:$0xf]
    %v1366 = vld [vmem:[#allocation7 + $0xec] sm:$0xf]
    %v1367 = vld [vmem:[#allocation7 + $0xf0] sm:$0xf]
    %v1368 = vld [vmem:[#allocation7 + $0xf4] sm:$0xf]
    %v1369 = vld [vmem:[#allocation7 + $0xf8] sm:$0xf]
    %v1370 = vld [vmem:[#allocation7 + $0xfc] sm:$0xf]
    %v1371 = vld [vmem:[%s4] sm:$0x1]
    %v1373 = vlaneseq
    %v1374 = vshrl.u32 %v1373, 7
    %v1375 = vsub.s32 0, %v1374
    %v1376 = vrot.slane %v1371, %v1375
    %v1442 = vunpack.c.l.b16 %v1307
    %v1443 = vunpack.c.l.b16 %v1308
    %v1444 = vunpack.c.l.b16 %v1309
    %v1445 = vunpack.c.l.b16 %v1310
    %v1446 = vunpack.c.l.b16 %v1311
    %v1447 = vunpack.c.l.b16 %v1312
    %v1448 = vunpack.c.l.b16 %v1313
    %v1449 = vunpack.c.l.b16 %v1314
    %v1450 = vunpack.c.l.b16 %v1315
    %v1451 = vunpack.c.l.b16 %v1316
    %v1452 = vunpack.c.l.b16 %v1317
    %v1453 = vunpack.c.l.b16 %v1318
    %v1454 = vunpack.c.l.b16 %v1319
    %v1455 = vunpack.c.l.b16 %v1320
    %v1456 = vunpack.c.l.b16 %v1321
    %v1457 = vunpack.c.l.b16 %v1322
    %v1458 = vunpack.c.l.b16 %v1323
    %v1459 = vunpack.c.l.b16 %v1324
    %v1460 = vunpack.c.l.b16 %v1325
    %v1461 = vunpack.c.l.b16 %v1326
    %v1462 = vunpack.c.l.b16 %v1327
    %v1463 = vunpack.c.l.b16 %v1328
    %v1464 = vunpack.c.l.b16 %v1329
    %v1465 = vunpack.c.l.b16 %v1330
    %v1466 = vunpack.c.l.b16 %v1331
    %v1467 = vunpack.c.l.b16 %v1332
    %v1468 = vunpack.c.l.b16 %v1333
    %v1469 = vunpack.c.l.b16 %v1334
    %v1470 = vunpack.c.l.b16 %v1335
    %v1471 = vunpack.c.l.b16 %v1336
    %v1472 = vunpack.c.l.b16 %v1337
    %v1473 = vunpack.c.l.b16 %v1338
    %v1474 = vunpack.c.l.b16 %v1339
    %v1475 = vunpack.c.l.b16 %v1340
    %v1476 = vunpack.c.l.b16 %v1341
    %v1477 = vunpack.c.l.b16 %v1342
    %v1478 = vunpack.c.l.b16 %v1343
    %v1479 = vunpack.c.l.b16 %v1344
    %v1480 = vunpack.c.l.b16 %v1345
    %v1481 = vunpack.c.l.b16 %v1346
    %v1482 = vunpack.c.l.b16 %v1347
    %v1483 = vunpack.c.l.b16 %v1348
    %v1484 = vunpack.c.l.b16 %v1349
    %v1485 = vunpack.c.l.b16 %v1350
    %v1486 = vunpack.c.l.b16 %v1351
    %v1487 = vunpack.c.l.b16 %v1352
    %v1488 = vunpack.c.l.b16 %v1353
    %v1489 = vunpack.c.l.b16 %v1354
    %v1490 = vunpack.c.l.b16 %v1355
    %v1491 = vunpack.c.l.b16 %v1356
    %v1492 = vunpack.c.l.b16 %v1357
    %v1493 = vunpack.c.l.b16 %v1358
    %v1494 = vunpack.c.l.b16 %v1359
    %v1495 = vunpack.c.l.b16 %v1360
    %v1496 = vunpack.c.l.b16 %v1361
    %v1497 = vunpack.c.l.b16 %v1362
    %v1498 = vunpack.c.l.b16 %v1363
    %v1499 = vunpack.c.l.b16 %v1364
    %v1500 = vunpack.c.l.b16 %v1365
    %v1501 = vunpack.c.l.b16 %v1366
    %v1502 = vunpack.c.l.b16 %v1367
    %v1503 = vunpack.c.l.b16 %v1368
    %v1504 = vunpack.c.l.b16 %v1369
    %v1505 = vunpack.c.l.b16 %v1370
    %v1506 = vpack.c.b16 %v1443, %v1442
    %v1507 = vpack.c.b16 %v1445, %v1444
    %v1508 = vpack.c.b16 %v1447, %v1446
    %v1509 = vpack.c.b16 %v1449, %v1448
    %v1510 = vpack.c.b16 %v1451, %v1450
    %v1511 = vpack.c.b16 %v1453, %v1452
    %v1512 = vpack.c.b16 %v1455, %v1454
    %v1513 = vpack.c.b16 %v1457, %v1456
    %v1514 = vpack.c.b16 %v1459, %v1458
    %v1515 = vpack.c.b16 %v1461, %v1460
    %v1516 = vpack.c.b16 %v1463, %v1462
    %v1517 = vpack.c.b16 %v1465, %v1464
    %v1518 = vpack.c.b16 %v1467, %v1466
    %v1519 = vpack.c.b16 %v1469, %v1468
    %v1520 = vpack.c.b16 %v1471, %v1470
    %v1521 = vpack.c.b16 %v1473, %v1472
    %v1522 = vpack.c.b16 %v1475, %v1474
    %v1523 = vpack.c.b16 %v1477, %v1476
    %v1524 = vpack.c.b16 %v1479, %v1478
    %v1525 = vpack.c.b16 %v1481, %v1480
    %v1526 = vpack.c.b16 %v1483, %v1482
    %v1527 = vpack.c.b16 %v1485, %v1484
    %v1528 = vpack.c.b16 %v1487, %v1486
    %v1529 = vpack.c.b16 %v1489, %v1488
    %v1530 = vpack.c.b16 %v1491, %v1490
    %v1531 = vpack.c.b16 %v1493, %v1492
    %v1532 = vpack.c.b16 %v1495, %v1494
    %v1533 = vpack.c.b16 %v1497, %v1496
    %v1534 = vpack.c.b16 %v1499, %v1498
    %v1535 = vpack.c.b16 %v1501, %v1500
    %v1536 = vpack.c.b16 %v1503, %v1502
    %v1537 = vpack.c.b16 %v1505, %v1504
    %1570 = vmatprep.subr.bf16.mxu0 0
    %1571 = vmatpush1.bf16.msra.mxu0 %v1506
    %1572 = vmatprep.subr.bf16.mxu0 0
    %1573 = vmatpush1.bf16.msra.mxu0 %v1507
    %1574 = vmatprep.subr.bf16.mxu0 0
    %1575 = vmatpush1.bf16.msra.mxu0 %v1508
    %1576 = vmatprep.subr.bf16.mxu0 0
    %1577 = vmatpush1.bf16.msra.mxu0 %v1509
    %1578 = vmatprep.subr.bf16.mxu0 0
    %1579 = vmatpush1.bf16.msra.mxu0 %v1510
    %1580 = vmatprep.subr.bf16.mxu0 0
    %1581 = vmatpush1.bf16.msra.mxu0 %v1511
    %1582 = vmatprep.subr.bf16.mxu0 0
    %1583 = vmatpush1.bf16.msra.mxu0 %v1512
    %1584 = vmatprep.subr.bf16.mxu0 0
    %1585 = vmatpush1.bf16.msra.mxu0 %v1513
    %1586 = vmatprep.subr.bf16.mxu0 0
    %1587 = vmatpush1.bf16.msra.mxu0 %v1514
    %1588 = vmatprep.subr.bf16.mxu0 0
    %1589 = vmatpush1.bf16.msra.mxu0 %v1515
    %1590 = vmatprep.subr.bf16.mxu0 0
    %1591 = vmatpush1.bf16.msra.mxu0 %v1516
    %1592 = vmatprep.subr.bf16.mxu0 0
    %1593 = vmatpush1.bf16.msra.mxu0 %v1517
    %1594 = vmatprep.subr.bf16.mxu0 0
    %1595 = vmatpush1.bf16.msra.mxu0 %v1518
    %1596 = vmatprep.subr.bf16.mxu0 0
    %1597 = vmatpush1.bf16.msra.mxu0 %v1519
    %1598 = vmatprep.subr.bf16.mxu0 0
    %1599 = vmatpush1.bf16.msra.mxu0 %v1520
    %1600 = vmatprep.subr.bf16.mxu0 0
    %1601 = vmatpush1.bf16.msra.mxu0 %v1521
    %1602 = vmatprep.mubr.bf16.mxu0 %v1304
    %1603 = vmatmul.mubr.bf16.gmra.mrb[0].mxu0 %v1303
    %v1604 = vpop.f32.mrb[0].mxu0
    %v1605 = vadd.f32 %v1376, %v1604
    %v1606 = vpop.f32.mrb[0].mxu0
    %v1607 = vpop.f32.mrb[0].mxu0
    %v1608 = vadd.f32 %v1376, %v1607
    %v1609 = vpop.f32.mrb[0].mxu0
    %1610 = vdwg.mxu0
    %1611 = vmatprep.subr.bf16.mxu0 0
    %1612 = vmatpush1.bf16.msra.mxu0 %v1522
    %1613 = vmatprep.subr.bf16.mxu0 0
    %1614 = vmatpush1.bf16.msra.mxu0 %v1523
    %1615 = vmatprep.subr.bf16.mxu0 0
    %1616 = vmatpush1.bf16.msra.mxu0 %v1524
    %1617 = vmatprep.subr.bf16.mxu0 0
    %1618 = vmatpush1.bf16.msra.mxu0 %v1525
    %1619 = vmatprep.subr.bf16.mxu0 0
    %1620 = vmatpush1.bf16.msra.mxu0 %v1526
    %1621 = vmatprep.subr.bf16.mxu0 0
    %1622 = vmatpush1.bf16.msra.mxu0 %v1527
    %1623 = vmatprep.subr.bf16.mxu0 0
    %1624 = vmatpush1.bf16.msra.mxu0 %v1528
    %1625 = vmatprep.subr.bf16.mxu0 0
    %1626 = vmatpush1.bf16.msra.mxu0 %v1529
    %1627 = vmatprep.subr.bf16.mxu0 0
    %1628 = vmatpush1.bf16.msra.mxu0 %v1530
    %1629 = vmatprep.subr.bf16.mxu0 0
    %1630 = vmatpush1.bf16.msra.mxu0 %v1531
    %1631 = vmatprep.subr.bf16.mxu0 0
    %1632 = vmatpush1.bf16.msra.mxu0 %v1532
    %1633 = vmatprep.subr.bf16.mxu0 0
    %1634 = vmatpush1.bf16.msra.mxu0 %v1533
    %1635 = vmatprep.subr.bf16.mxu0 0
    %1636 = vmatpush1.bf16.msra.mxu0 %v1534
    %1637 = vmatprep.subr.bf16.mxu0 0
    %1638 = vmatpush1.bf16.msra.mxu0 %v1535
    %1639 = vmatprep.subr.bf16.mxu0 0
    %1640 = vmatpush1.bf16.msra.mxu0 %v1536
    %1641 = vmatprep.subr.bf16.mxu0 0
    %1642 = vmatpush1.bf16.msra.mxu0 %v1537
    %1643 = vmatprep.mubr.bf16.mxu0 %v1306
    %1644 = vmatmul.mubr.bf16.gmra.mrb[0].mxu0 %v1305
    %v1645 = vpop.f32.mrb[0].mxu0
    %v1646 = vadd.f32 %v1605, %v1645
    %v1647 = vpop.f32.mrb[0].mxu0
    %v1648 = vpop.f32.mrb[0].mxu0
    %v1649 = vadd.f32 %v1608, %v1648
    %v1650 = vpop.f32.mrb[0].mxu0
    %1651 = vdwg.mxu0
    %vm1652 = vcmp.ge.f32.partialorder %v1646, 0.0
    %vm1653 = vcmp.ge.f32.partialorder %v1649, 0.0
    %v1654 = vmul.f32 %v1646, 0.2
    %v1655 = vmul.f32 %v1649, 0.2
    %v1656 = vsel %vm1652, %v1646, %v1654
    %v1657 = vsel %vm1653, %v1649, %v1655
    %v1658 = vpack.c.bf16 %v1657, %v1656
    %v1659 = vld [vmem:[#allocation8] sm:$0xf]
    %v1660 = vld [vmem:[#allocation8 + $0x4] sm:$0xf]
    %v1661 = vld [vmem:[#allocation8 + $0x8] sm:$0xf]
    %v1662 = vld [vmem:[#allocation8 + $0xc] sm:$0xf]
    %v1663 = vld [vmem:[#allocation8 + $0x10] sm:$0xf]
    %v1664 = vld [vmem:[#allocation8 + $0x14] sm:$0xf]
    %v1665 = vld [vmem:[#allocation8 + $0x18] sm:$0xf]
    %v1666 = vld [vmem:[#allocation8 + $0x1c] sm:$0xf]
    %v1667 = vld [vmem:[#allocation8 + $0x20] sm:$0xf]
    %v1668 = vld [vmem:[#allocation8 + $0x24] sm:$0xf]
    %v1669 = vld [vmem:[#allocation8 + $0x28] sm:$0xf]
    %v1670 = vld [vmem:[#allocation8 + $0x2c] sm:$0xf]
    %v1671 = vld [vmem:[#allocation8 + $0x30] sm:$0xf]
    %v1672 = vld [vmem:[#allocation8 + $0x34] sm:$0xf]
    %v1673 = vld [vmem:[#allocation8 + $0x38] sm:$0xf]
    %v1674 = vld [vmem:[#allocation8 + $0x3c] sm:$0xf]
    %v1675 = vld [vmem:[%s6] sm:$0x1]
    %v1677 = vlaneseq
    %v1678 = vshrl.u32 %v1677, 7
    %v1679 = vsub.s32 0, %v1678
    %v1680 = vrot.slane %v1675, %v1679
    %v1698 = vunpack.c.l.b16 %v1659
    %v1699 = vunpack.c.l.b16 %v1660
    %v1700 = vunpack.c.l.b16 %v1661
    %v1701 = vunpack.c.l.b16 %v1662
    %v1702 = vunpack.c.l.b16 %v1663
    %v1703 = vunpack.c.l.b16 %v1664
    %v1704 = vunpack.c.l.b16 %v1665
    %v1705 = vunpack.c.l.b16 %v1666
    %v1706 = vunpack.c.l.b16 %v1667
    %v1707 = vunpack.c.l.b16 %v1668
    %v1708 = vunpack.c.l.b16 %v1669
    %v1709 = vunpack.c.l.b16 %v1670
    %v1710 = vunpack.c.l.b16 %v1671
    %v1711 = vunpack.c.l.b16 %v1672
    %v1712 = vunpack.c.l.b16 %v1673
    %v1713 = vunpack.c.l.b16 %v1674
    %v1714 = vpack.c.b16 %v1699, %v1698
    %v1715 = vpack.c.b16 %v1701, %v1700
    %v1716 = vpack.c.b16 %v1703, %v1702
    %v1717 = vpack.c.b16 %v1705, %v1704
    %v1718 = vpack.c.b16 %v1707, %v1706
    %v1719 = vpack.c.b16 %v1709, %v1708
    %v1720 = vpack.c.b16 %v1711, %v1710
    %v1721 = vpack.c.b16 %v1713, %v1712
    %1730 = vmatprep.subr.bf16.mxu0 0
    %1731 = vmatpush1.bf16.msra.mxu0 %v1714
    %1732 = vmatprep.subr.bf16.mxu0 0
    %1733 = vmatpush1.bf16.msra.mxu0 %v1715
    %1734 = vmatprep.subr.bf16.mxu0 0
    %1735 = vmatpush1.bf16.msra.mxu0 %v1716
    %1736 = vmatprep.subr.bf16.mxu0 0
    %1737 = vmatpush1.bf16.msra.mxu0 %v1717
    %1738 = vmatprep.subr.bf16.mxu0 0
    %1739 = vmatpush1.bf16.msra.mxu0 %v1718
    %1740 = vmatprep.subr.bf16.mxu0 0
    %1741 = vmatpush1.bf16.msra.mxu0 %v1719
    %1742 = vmatprep.subr.bf16.mxu0 0
    %1743 = vmatpush1.bf16.msra.mxu0 %v1720
    %1744 = vmatprep.subr.bf16.mxu0 0
    %1745 = vmatpush1.bf16.msra.mxu0 %v1721
    %1746 = vmatprep.subr.bf16.mxu0 0
    %1747 = vmatpush1.bf16.msra.mxu0 0
    %1748 = vmatprep.subr.bf16.mxu0 0
    %1749 = vmatpush1.bf16.msra.mxu0 0
    %1750 = vmatprep.subr.bf16.mxu0 0
    %1751 = vmatpush1.bf16.msra.mxu0 0
    %1752 = vmatprep.subr.bf16.mxu0 0
    %1753 = vmatpush1.bf16.msra.mxu0 0
    %1754 = vmatprep.subr.bf16.mxu0 0
    %1755 = vmatpush1.bf16.msra.mxu0 0
    %1756 = vmatprep.subr.bf16.mxu0 0
    %1757 = vmatpush1.bf16.msra.mxu0 0
    %1758 = vmatprep.subr.bf16.mxu0 0
    %1759 = vmatpush1.bf16.msra.mxu0 0
    %1760 = vmatprep.subr.bf16.mxu0 0
    %1761 = vmatpush1.bf16.msra.mxu0 0
    %1762 = vmatprep.mubr.bf16.mxu0 0
    %1763 = vmatmul.mubr.bf16.gmra.mrb[0].mxu0 %v1658
    %v1764 = vpop.f32.mrb[0].mxu0
    %v1765 = vadd.f32 %v1680, %v1764
    %v1766 = vpop.f32.mrb[0].mxu0
    %v1767 = vpop.f32.mrb[0].mxu0
    %v1768 = vadd.f32 %v1680, %v1767
    %v1769 = vpop.f32.mrb[0].mxu0
    %1770 = vdwg.mxu0
    %vm1771 = vcmp.ge.f32.partialorder %v1765, 0.0
    %vm1772 = vcmp.ge.f32.partialorder %v1768, 0.0
    %v1773 = vmul.f32 %v1765, 0.2
    %v1774 = vmul.f32 %v1768, 0.2
    %v1775 = vsel %vm1771, %v1765, %v1773
    %v1776 = vsel %vm1772, %v1768, %v1774
    %v1777 = vpack.c.bf16 %v1776, %v1775
    %v1778 = vld [vmem:[#allocation10] sm:$0xf]
    %v1779 = vld [vmem:[#allocation10 + $0x4] sm:$0xf]
    %v1780 = vld [vmem:[#allocation10 + $0x8] sm:$0xf]
    %v1781 = vld [vmem:[#allocation10 + $0xc] sm:$0xf]
    %v1782 = vld [vmem:[#allocation10 + $0x10] sm:$0xf]
    %v1783 = vld [vmem:[#allocation10 + $0x14] sm:$0xf]
    %v1784 = vld [vmem:[#allocation10 + $0x18] sm:$0xf]
    %v1785 = vld [vmem:[#allocation10 + $0x1c] sm:$0xf]
    %v1786 = vld [vmem:[#allocation10 + $0x20] sm:$0xf]
    %v1787 = vld [vmem:[#allocation10 + $0x24] sm:$0xf]
    %v1788 = vld [vmem:[#allocation10 + $0x28] sm:$0xf]
    %v1789 = vld [vmem:[#allocation10 + $0x2c] sm:$0xf]
    %v1790 = vld [vmem:[#allocation10 + $0x30] sm:$0xf]
    %v1791 = vld [vmem:[#allocation10 + $0x34] sm:$0xf]
    %v1792 = vld [vmem:[#allocation10 + $0x38] sm:$0xf]
    %v1793 = vld [vmem:[#allocation10 + $0x3c] sm:$0xf]
    %v1794 = vld [vmem:[%s8] sm:$0x1]
    %v1796 = vlaneseq
    %v1797 = vshrl.u32 %v1796, 7
    %v1798 = vsub.s32 0, %v1797
    %v1799 = vrot.slane %v1794, %v1798
    %v1817 = vunpack.c.l.b16 %v1778
    %v1818 = vunpack.c.l.b16 %v1779
    %v1819 = vunpack.c.l.b16 %v1780
    %v1820 = vunpack.c.l.b16 %v1781
    %v1821 = vunpack.c.l.b16 %v1782
    %v1822 = vunpack.c.l.b16 %v1783
    %v1823 = vunpack.c.l.b16 %v1784
    %v1824 = vunpack.c.l.b16 %v1785
    %v1825 = vunpack.c.l.b16 %v1786
    %v1826 = vunpack.c.l.b16 %v1787
    %v1827 = vunpack.c.l.b16 %v1788
    %v1828 = vunpack.c.l.b16 %v1789
    %v1829 = vunpack.c.l.b16 %v1790
    %v1830 = vunpack.c.l.b16 %v1791
    %v1831 = vunpack.c.l.b16 %v1792
    %v1832 = vunpack.c.l.b16 %v1793
    %v1833 = vpack.c.b16 %v1818, %v1817
    %v1834 = vpack.c.b16 %v1820, %v1819
    %v1835 = vpack.c.b16 %v1822, %v1821
    %v1836 = vpack.c.b16 %v1824, %v1823
    %v1837 = vpack.c.b16 %v1826, %v1825
    %v1838 = vpack.c.b16 %v1828, %v1827
    %v1839 = vpack.c.b16 %v1830, %v1829
    %v1840 = vpack.c.b16 %v1832, %v1831
    %1849 = vmatprep.subr.bf16.mxu0 0
    %1850 = vmatpush1.bf16.msra.mxu0 %v1833
    %1851 = vmatprep.subr.bf16.mxu0 0
    %1852 = vmatpush1.bf16.msra.mxu0 %v1834
    %1853 = vmatprep.subr.bf16.mxu0 0
    %1854 = vmatpush1.bf16.msra.mxu0 %v1835
    %1855 = vmatprep.subr.bf16.mxu0 0
    %1856 = vmatpush1.bf16.msra.mxu0 %v1836
    %1857 = vmatprep.subr.bf16.mxu0 0
    %1858 = vmatpush1.bf16.msra.mxu0 %v1837
    %1859 = vmatprep.subr.bf16.mxu0 0
    %1860 = vmatpush1.bf16.msra.mxu0 %v1838
    %1861 = vmatprep.subr.bf16.mxu0 0
    %1862 = vmatpush1.bf16.msra.mxu0 %v1839
    %1863 = vmatprep.subr.bf16.mxu0 0
    %1864 = vmatpush1.bf16.msra.mxu0 %v1840
    %1865 = vmatprep.subr.bf16.mxu0 0
    %1866 = vmatpush1.bf16.msra.mxu0 0
    %1867 = vmatprep.subr.bf16.mxu0 0
    %1868 = vmatpush1.bf16.msra.mxu0 0
    %1869 = vmatprep.subr.bf16.mxu0 0
    %1870 = vmatpush1.bf16.msra.mxu0 0
    %1871 = vmatprep.subr.bf16.mxu0 0
    %1872 = vmatpush1.bf16.msra.mxu0 0
    %1873 = vmatprep.subr.bf16.mxu0 0
    %1874 = vmatpush1.bf16.msra.mxu0 0
    %1875 = vmatprep.subr.bf16.mxu0 0
    %1876 = vmatpush1.bf16.msra.mxu0 0
    %1877 = vmatprep.subr.bf16.mxu0 0
    %1878 = vmatpush1.bf16.msra.mxu0 0
    %1879 = vmatprep.subr.bf16.mxu0 0
    %1880 = vmatpush1.bf16.msra.mxu0 0
    %1881 = vmatprep.mubr.bf16.mxu0 0
    %1882 = vmatmul.mubr.bf16.gmra.mrb[0].mxu0 %v1777
    %v1883 = vpop.f32.mrb[0].mxu0
    %v1884 = vadd.f32 %v1799, %v1883
    %v1885 = vpop.f32.mrb[0].mxu0
    %v1886 = vpop.f32.mrb[0].mxu0
    %v1887 = vadd.f32 %v1799, %v1886
    %v1888 = vpop.f32.mrb[0].mxu0
    %1889 = vdwg.mxu0
    %v1890 = vpack.c.bf16 %v1887, %v1884
    %v1892 = vunpack.c.l.b16 %v1890
    %v1893 = vunpack.c.h.b16 %v1890
    %v1894 = vpack.c.b16 %v1892, %v1892
    %v1895 = vpack.c.b16 %v1893, %v1893
    %1898 = vst [vmem:[#allocation11] sm:$0xf] %v1894
    %1899 = vst [vmem:[#allocation11 + $0x4] sm:$0xf] %v1895
    // Predicated region
    $region58: #{tpu_custom_call.1} parent=1 // pred_check
      _
    $region59: #{tpu_custom_call.1} parent=1 // pred_check_branch
      %1901 = sbr.rel (0) target = $region61
    $region60: #{tpu_custom_call.1} parent=1 // pred_region
      %s1903 = ssub.s32 128, 128
      %1904 = vsyncadd [#allocation4], %s1903
      %s1905 = sshll.u32 [#allocation11], 4
      %s1906 = int_to_ptr.vmem [resolvable:$true] %s1905
      %1911 = dma.vmem_to_hbm [thread:$0]  %s1906, 128, %s9, [#allocation4], 64, 64, 4
    $region61: #{tpu_custom_call.1} parent=1 // pred_fallthru
      _
    // Predicated region
    $region62: #{tpu_custom_call.1} parent=1 // pred_check
      _
    $region63: #{tpu_custom_call.1} parent=1 // pred_check_branch
      %1913 = sbr.rel (0) target = $region65
    $region64: #{tpu_custom_call.1} parent=1 // pred_region
      %1914 = dma.done [#allocation4], 128
    $region65: #{tpu_custom_call.1} parent=1 // pred_fallthru
      _
    %1915 = vsyncpa [#allocation3], 1
    %1916 = vsyncpa [#allocation6], 1
    %1917 = vsyncpa [#allocation9], 1
    %1918 = vsyncpa [#allocation4], 1

</llo_original>
